<compile_context>
chip_gen: v5e
topology: v5e:2x2
jax: 0.10.0
libtpu: 0.0.40
codegen_flags: <defaults>
</compile_context>

<pallas_src>
import jax
import jax.numpy as jnp
from jax.experimental import pallas as pl
from jax.experimental.pallas import tpu as pltpu

NUM_LAYERS = 10


def layer_dims(in_features: int):
    """Mirror the original __init__ size schedule."""
    dims = [in_features]
    d = in_features
    for div in (4, 2, 2, 2, 2):      # enc1..enc5
        d //= div
        dims.append(d)
    for mul in (2, 2, 2, 2, 4):      # dec1..dec5
        d *= mul
        dims.append(d)
    return dims


def _autoencoder_kernel(x_ref, *refs):
    """Fused 10-layer MLP: h = relu(h @ W_l + b_l), l = 1..10.

    refs = (w1..w10, b1..b10, out_ref). Activations are fed to the MXU in bf16,
    accumulation / bias / ReLU in f32, final layer written out in f32.
    """
    w_refs = refs[:NUM_LAYERS]
    b_refs = refs[NUM_LAYERS:2 * NUM_LAYERS]
    o_ref = refs[2 * NUM_LAYERS]

    h = x_ref[...]                                   # bf16 activations
    acc = None
    for w_ref, b_ref in zip(w_refs, b_refs):
        acc = jnp.dot(h, w_ref[...], preferred_element_type=jnp.float32)   # MXU
        acc = jnp.maximum(acc + b_ref[...], 0.0)                           # f32 VPU
        h = acc.astype(jnp.bfloat16)                                       # next MXU input
    o_ref[...] = acc.astype(o_ref.dtype)


def _cost_estimate(x, weights, biases, out_dim):
    B = x.shape[0]
    flops = 2 * B * sum(int(w.shape[0]) * int(w.shape[1]) for w in weights)
    bytes_accessed = (
        x.size * x.dtype.itemsize
        + sum(w.size * w.dtype.itemsize for w in weights)
        + sum(b.size * b.dtype.itemsize for b in biases)
        + B * out_dim * 4
    )
    return pl.CostEstimate(flops=flops, transcendentals=0,
                           bytes_accessed=bytes_accessed)


def autoencoder_forward(x, weights, biases, *, batch_tile=128):
    B, F = x.shape
    out_dim = weights[-1].shape[1]
    cost = _cost_estimate(x, weights, biases, out_dim)

    if B <= batch_tile or B % batch_tile != 0:
        # Latency path: whole problem resident in VMEM, single invocation,
        # no grid / no pipelining / no double-buffered weight copies.
        vmem_spec = pl.BlockSpec(memory_space=pltpu.MemorySpace.VMEM)
        return pl.pallas_call(
            _autoencoder_kernel,
            in_specs=[vmem_spec] * (1 + 2 * NUM_LAYERS),
            out_specs=vmem_spec,
            out_shape=jax.ShapeDtypeStruct((B, out_dim), jnp.float32),
            cost_estimate=cost,
        )(x, *weights, *biases)

    # Throughput path: tile the batch across the grid. "parallel" lets v7x shard
    # rows across its two TensorCores; v5e/v6e just pipeline x/out DMA vs compute.
    # Weights/biases use a constant index_map -> fetched once (bf16 keeps the
    # double-buffer cost negligible, ~2.4 MB total).
    grid = (B // batch_tile,)
    in_specs = [pl.BlockSpec((batch_tile, F), lambda i: (i, 0))]
    in_specs += [pl.BlockSpec(w.shape, lambda i: (0, 0)) for w in weights]
    in_specs += [pl.BlockSpec(b.shape, lambda i: (0, 0)) for b in biases]
    return pl.pallas_call(
        _autoencoder_kernel,
        grid=grid,
        in_specs=in_specs,
        out_specs=pl.BlockSpec((batch_tile, out_dim), lambda i: (i, 0)),
        out_shape=jax.ShapeDtypeStruct((B, out_dim), jnp.float32),
        compiler_params=pltpu.CompilerParams(dimension_semantics=("parallel",)),
        cost_estimate=cost,
    )(x, *weights, *biases)


def init_params(key, dims):
    """Deterministic init ~ PyTorch Linear default U(-1/sqrt(in), 1/sqrt(in)).

    Weights stored bf16 (pre-transposed), biases f32 as (1, out)."""
    weights, biases = [], []
    for l in range(NUM_LAYERS):
        fan_in, fan_out = dims[l], dims[l + 1]
        key, kw, kb = jax.random.split(key, 3)
        bound = 1.0 / jnp.sqrt(jnp.float32(fan_in))
        w = jax.random.uniform(kw, (fan_in, fan_out), jnp.float32, -bound, bound)
        b = jax.random.uniform(kb, (1, fan_out), jnp.float32, -bound, bound)
        weights.append(w.astype(jnp.bfloat16))
        biases.append(b)
    return weights, biases


def reference_forward(x, weights, biases):
    """Pure-JAX reference using the identical bf16-in / f32-accumulate recipe."""
    h = x.astype(jnp.bfloat16)
    acc = None
    for w, b in zip(weights, biases):
        acc = jnp.dot(h, w, preferred_element_type=jnp.float32) + b
        acc = jnp.maximum(acc, 0.0)
        h = acc.astype(jnp.bfloat16)
    return acc


if __name__ == "__main__":
    IN_FEATURES = 1024   # small stand-in for 604*604 (same ratio schedule)
    dims = layer_dims(IN_FEATURES)   # [1024,256,128,64,32,16,32,64,128,256,1024]

    key = jax.random.PRNGKey(0)
    key, kx = jax.random.split(key)
    weights, biases = init_params(key, dims)

    # ---- latency path: small batch, single VMEM-resident invocation ----
    x_small = jax.random.normal(kx, (8, IN_FEATURES), jnp.float32).astype(jnp.bfloat16)
    out_small = jax.block_until_ready(autoencoder_forward(x_small, weights, biases))
    ref_small = reference_forward(x_small, weights, biases)
    assert out_small.shape == (8, IN_FEATURES), out_small.shape
    assert jnp.allclose(out_small, ref_small, atol=2e-2, rtol=2e-2), \
        "small-batch mismatch vs JAX reference"

    # ---- throughput path: batch tiled over the grid ("parallel") ----
    key, kx2 = jax.random.split(key)
    x_big = jax.random.normal(kx2, (256, IN_FEATURES), jnp.float32).astype(jnp.bfloat16)
    out_big = jax.block_until_ready(
        autoencoder_forward(x_big, weights, biases, batch_tile=128))
    ref_big = reference_forward(x_big, weights, biases)
    assert out_big.shape == (256, IN_FEATURES), out_big.shape
    assert jnp.allclose(out_big, ref_big, atol=2e-2, rtol=2e-2), \
        "tiled-batch mismatch vs JAX reference"

    print("KERNEL_OK")
</pallas_src>

<mosaic_0001>
module attributes {stable_mosaic.version = 11 : i64} {
  func.func @_autoencoder_kernel(%arg0: memref<8x1024xbf16, #tpu.memory_space<vmem>>, %arg1: memref<1024x256xbf16, #tpu.memory_space<vmem>>, %arg2: memref<256x128xbf16, #tpu.memory_space<vmem>>, %arg3: memref<128x64xbf16, #tpu.memory_space<vmem>>, %arg4: memref<64x32xbf16, #tpu.memory_space<vmem>>, %arg5: memref<32x16xbf16, #tpu.memory_space<vmem>>, %arg6: memref<16x32xbf16, #tpu.memory_space<vmem>>, %arg7: memref<32x64xbf16, #tpu.memory_space<vmem>>, %arg8: memref<64x128xbf16, #tpu.memory_space<vmem>>, %arg9: memref<128x256xbf16, #tpu.memory_space<vmem>>, %arg10: memref<256x1024xbf16, #tpu.memory_space<vmem>>, %arg11: memref<1x256xf32, #tpu.memory_space<vmem>>, %arg12: memref<1x128xf32, #tpu.memory_space<vmem>>, %arg13: memref<1x64xf32, #tpu.memory_space<vmem>>, %arg14: memref<1x32xf32, #tpu.memory_space<vmem>>, %arg15: memref<1x16xf32, #tpu.memory_space<vmem>>, %arg16: memref<1x32xf32, #tpu.memory_space<vmem>>, %arg17: memref<1x64xf32, #tpu.memory_space<vmem>>, %arg18: memref<1x128xf32, #tpu.memory_space<vmem>>, %arg19: memref<1x256xf32, #tpu.memory_space<vmem>>, %arg20: memref<1x1024xf32, #tpu.memory_space<vmem>>, %arg21: memref<8x1024xf32, #tpu.memory_space<vmem>>) attributes {dimension_semantics = [], scalar_prefetch = 0 : i64, scratch_operands = 0 : i64, tpu.core_type = #tpu.core_type<tc>} {
    %c0 = arith.constant 0 : index
    %c0_0 = arith.constant 0 : index
    %0 = vector.load %arg0[%c0, %c0_0] : memref<8x1024xbf16, #tpu.memory_space<vmem>>, vector<8x1024xbf16>
    %c0_1 = arith.constant 0 : index
    %c0_2 = arith.constant 0 : index
    %1 = vector.load %arg1[%c0_1, %c0_2] : memref<1024x256xbf16, #tpu.memory_space<vmem>>, vector<1024x256xbf16>
    %cst = arith.constant dense<0.000000e+00> : vector<8x256xf32>
    %2 = tpu.matmul %0, %1, %cst {dimension_numbers = #tpu.dot_dimension_numbers<[1], [0], [0], [1], [0, 0, 1, 1], [], []>} : vector<8x1024xbf16>, vector<1024x256xbf16>, vector<8x256xf32> -> vector<8x256xf32>
    %c0_3 = arith.constant 0 : index
    %c0_4 = arith.constant 0 : index
    %3 = vector.load %arg11[%c0_3, %c0_4] : memref<1x256xf32, #tpu.memory_space<vmem>>, vector<1x256xf32>
    %4 = vector.broadcast %3 : vector<1x256xf32> to vector<8x256xf32>
    %5 = arith.addf %2, %4 : vector<8x256xf32>
    %cst_5 = arith.constant 0.000000e+00 : f32
    %6 = vector.broadcast %cst_5 : f32 to vector<8x256xf32>
    %7 = arith.maximumf %5, %6 : vector<8x256xf32>
    %8 = arith.truncf %7 : vector<8x256xf32> to vector<8x256xbf16>
    %c0_6 = arith.constant 0 : index
    %c0_7 = arith.constant 0 : index
    %9 = vector.load %arg2[%c0_6, %c0_7] : memref<256x128xbf16, #tpu.memory_space<vmem>>, vector<256x128xbf16>
    %cst_8 = arith.constant dense<0.000000e+00> : vector<8x128xf32>
    %10 = tpu.matmul %8, %9, %cst_8 {dimension_numbers = #tpu.dot_dimension_numbers<[1], [0], [0], [1], [0, 0, 1, 1], [], []>} : vector<8x256xbf16>, vector<256x128xbf16>, vector<8x128xf32> -> vector<8x128xf32>
    %c0_9 = arith.constant 0 : index
    %c0_10 = arith.constant 0 : index
    %11 = vector.load %arg12[%c0_9, %c0_10] : memref<1x128xf32, #tpu.memory_space<vmem>>, vector<1x128xf32>
    %12 = vector.broadcast %11 : vector<1x128xf32> to vector<8x128xf32>
    %13 = arith.addf %10, %12 : vector<8x128xf32>
    %cst_11 = arith.constant 0.000000e+00 : f32
    %14 = vector.broadcast %cst_11 : f32 to vector<8x128xf32>
    %15 = arith.maximumf %13, %14 : vector<8x128xf32>
    %16 = arith.truncf %15 : vector<8x128xf32> to vector<8x128xbf16>
    %c0_12 = arith.constant 0 : index
    %c0_13 = arith.constant 0 : index
    %17 = vector.load %arg3[%c0_12, %c0_13] : memref<128x64xbf16, #tpu.memory_space<vmem>>, vector<128x64xbf16>
    %cst_14 = arith.constant dense<0.000000e+00> : vector<8x64xf32>
    %18 = tpu.matmul %16, %17, %cst_14 {dimension_numbers = #tpu.dot_dimension_numbers<[1], [0], [0], [1], [0, 0, 1, 1], [], []>} : vector<8x128xbf16>, vector<128x64xbf16>, vector<8x64xf32> -> vector<8x64xf32>
    %c0_15 = arith.constant 0 : index
    %c0_16 = arith.constant 0 : index
    %19 = vector.load %arg13[%c0_15, %c0_16] : memref<1x64xf32, #tpu.memory_space<vmem>>, vector<1x64xf32>
    %20 = vector.broadcast %19 : vector<1x64xf32> to vector<8x64xf32>
    %21 = arith.addf %18, %20 : vector<8x64xf32>
    %cst_17 = arith.constant 0.000000e+00 : f32
    %22 = vector.broadcast %cst_17 : f32 to vector<8x64xf32>
    %23 = arith.maximumf %21, %22 : vector<8x64xf32>
    %24 = arith.truncf %23 : vector<8x64xf32> to vector<8x64xbf16>
    %c0_18 = arith.constant 0 : index
    %c0_19 = arith.constant 0 : index
    %25 = vector.load %arg4[%c0_18, %c0_19] : memref<64x32xbf16, #tpu.memory_space<vmem>>, vector<64x32xbf16>
    %cst_20 = arith.constant dense<0.000000e+00> : vector<8x32xf32>
    %26 = tpu.matmul %24, %25, %cst_20 {dimension_numbers = #tpu.dot_dimension_numbers<[1], [0], [0], [1], [0, 0, 1, 1], [], []>} : vector<8x64xbf16>, vector<64x32xbf16>, vector<8x32xf32> -> vector<8x32xf32>
    %c0_21 = arith.constant 0 : index
    %c0_22 = arith.constant 0 : index
    %27 = vector.load %arg14[%c0_21, %c0_22] : memref<1x32xf32, #tpu.memory_space<vmem>>, vector<1x32xf32>
    %28 = vector.broadcast %27 : vector<1x32xf32> to vector<8x32xf32>
    %29 = arith.addf %26, %28 : vector<8x32xf32>
    %cst_23 = arith.constant 0.000000e+00 : f32
    %30 = vector.broadcast %cst_23 : f32 to vector<8x32xf32>
    %31 = arith.maximumf %29, %30 : vector<8x32xf32>
    %32 = arith.truncf %31 : vector<8x32xf32> to vector<8x32xbf16>
    %c0_24 = arith.constant 0 : index
    %c0_25 = arith.constant 0 : index
    %33 = vector.load %arg5[%c0_24, %c0_25] : memref<32x16xbf16, #tpu.memory_space<vmem>>, vector<32x16xbf16>
    %cst_26 = arith.constant dense<0.000000e+00> : vector<8x16xf32>
    %34 = tpu.matmul %32, %33, %cst_26 {dimension_numbers = #tpu.dot_dimension_numbers<[1], [0], [0], [1], [0, 0, 1, 1], [], []>} : vector<8x32xbf16>, vector<32x16xbf16>, vector<8x16xf32> -> vector<8x16xf32>
    %c0_27 = arith.constant 0 : index
    %c0_28 = arith.constant 0 : index
    %35 = vector.load %arg15[%c0_27, %c0_28] : memref<1x16xf32, #tpu.memory_space<vmem>>, vector<1x16xf32>
    %36 = vector.broadcast %35 : vector<1x16xf32> to vector<8x16xf32>
    %37 = arith.addf %34, %36 : vector<8x16xf32>
    %cst_29 = arith.constant 0.000000e+00 : f32
    %38 = vector.broadcast %cst_29 : f32 to vector<8x16xf32>
    %39 = arith.maximumf %37, %38 : vector<8x16xf32>
    %40 = arith.truncf %39 : vector<8x16xf32> to vector<8x16xbf16>
    %c0_30 = arith.constant 0 : index
    %c0_31 = arith.constant 0 : index
    %41 = vector.load %arg6[%c0_30, %c0_31] : memref<16x32xbf16, #tpu.memory_space<vmem>>, vector<16x32xbf16>
    %cst_32 = arith.constant dense<0.000000e+00> : vector<8x32xf32>
    %42 = tpu.matmul %40, %41, %cst_32 {dimension_numbers = #tpu.dot_dimension_numbers<[1], [0], [0], [1], [0, 0, 1, 1], [], []>} : vector<8x16xbf16>, vector<16x32xbf16>, vector<8x32xf32> -> vector<8x32xf32>
    %c0_33 = arith.constant 0 : index
    %c0_34 = arith.constant 0 : index
    %43 = vector.load %arg16[%c0_33, %c0_34] : memref<1x32xf32, #tpu.memory_space<vmem>>, vector<1x32xf32>
    %44 = vector.broadcast %43 : vector<1x32xf32> to vector<8x32xf32>
    %45 = arith.addf %42, %44 : vector<8x32xf32>
    %cst_35 = arith.constant 0.000000e+00 : f32
    %46 = vector.broadcast %cst_35 : f32 to vector<8x32xf32>
    %47 = arith.maximumf %45, %46 : vector<8x32xf32>
    %48 = arith.truncf %47 : vector<8x32xf32> to vector<8x32xbf16>
    %c0_36 = arith.constant 0 : index
    %c0_37 = arith.constant 0 : index
    %49 = vector.load %arg7[%c0_36, %c0_37] : memref<32x64xbf16, #tpu.memory_space<vmem>>, vector<32x64xbf16>
    %cst_38 = arith.constant dense<0.000000e+00> : vector<8x64xf32>
    %50 = tpu.matmul %48, %49, %cst_38 {dimension_numbers = #tpu.dot_dimension_numbers<[1], [0], [0], [1], [0, 0, 1, 1], [], []>} : vector<8x32xbf16>, vector<32x64xbf16>, vector<8x64xf32> -> vector<8x64xf32>
    %c0_39 = arith.constant 0 : index
    %c0_40 = arith.constant 0 : index
    %51 = vector.load %arg17[%c0_39, %c0_40] : memref<1x64xf32, #tpu.memory_space<vmem>>, vector<1x64xf32>
    %52 = vector.broadcast %51 : vector<1x64xf32> to vector<8x64xf32>
    %53 = arith.addf %50, %52 : vector<8x64xf32>
    %cst_41 = arith.constant 0.000000e+00 : f32
    %54 = vector.broadcast %cst_41 : f32 to vector<8x64xf32>
    %55 = arith.maximumf %53, %54 : vector<8x64xf32>
    %56 = arith.truncf %55 : vector<8x64xf32> to vector<8x64xbf16>
    %c0_42 = arith.constant 0 : index
    %c0_43 = arith.constant 0 : index
    %57 = vector.load %arg8[%c0_42, %c0_43] : memref<64x128xbf16, #tpu.memory_space<vmem>>, vector<64x128xbf16>
    %cst_44 = arith.constant dense<0.000000e+00> : vector<8x128xf32>
    %58 = tpu.matmul %56, %57, %cst_44 {dimension_numbers = #tpu.dot_dimension_numbers<[1], [0], [0], [1], [0, 0, 1, 1], [], []>} : vector<8x64xbf16>, vector<64x128xbf16>, vector<8x128xf32> -> vector<8x128xf32>
    %c0_45 = arith.constant 0 : index
    %c0_46 = arith.constant 0 : index
    %59 = vector.load %arg18[%c0_45, %c0_46] : memref<1x128xf32, #tpu.memory_space<vmem>>, vector<1x128xf32>
    %60 = vector.broadcast %59 : vector<1x128xf32> to vector<8x128xf32>
    %61 = arith.addf %58, %60 : vector<8x128xf32>
    %cst_47 = arith.constant 0.000000e+00 : f32
    %62 = vector.broadcast %cst_47 : f32 to vector<8x128xf32>
    %63 = arith.maximumf %61, %62 : vector<8x128xf32>
    %64 = arith.truncf %63 : vector<8x128xf32> to vector<8x128xbf16>
    %c0_48 = arith.constant 0 : index
    %c0_49 = arith.constant 0 : index
    %65 = vector.load %arg9[%c0_48, %c0_49] : memref<128x256xbf16, #tpu.memory_space<vmem>>, vector<128x256xbf16>
    %cst_50 = arith.constant dense<0.000000e+00> : vector<8x256xf32>
    %66 = tpu.matmul %64, %65, %cst_50 {dimension_numbers = #tpu.dot_dimension_numbers<[1], [0], [0], [1], [0, 0, 1, 1], [], []>} : vector<8x128xbf16>, vector<128x256xbf16>, vector<8x256xf32> -> vector<8x256xf32>
    %c0_51 = arith.constant 0 : index
    %c0_52 = arith.constant 0 : index
    %67 = vector.load %arg19[%c0_51, %c0_52] : memref<1x256xf32, #tpu.memory_space<vmem>>, vector<1x256xf32>
    %68 = vector.broadcast %67 : vector<1x256xf32> to vector<8x256xf32>
    %69 = arith.addf %66, %68 : vector<8x256xf32>
    %cst_53 = arith.constant 0.000000e+00 : f32
    %70 = vector.broadcast %cst_53 : f32 to vector<8x256xf32>
    %71 = arith.maximumf %69, %70 : vector<8x256xf32>
    %72 = arith.truncf %71 : vector<8x256xf32> to vector<8x256xbf16>
    %c0_54 = arith.constant 0 : index
    %c0_55 = arith.constant 0 : index
    %73 = vector.load %arg10[%c0_54, %c0_55] : memref<256x1024xbf16, #tpu.memory_space<vmem>>, vector<256x1024xbf16>
    %cst_56 = arith.constant dense<0.000000e+00> : vector<8x1024xf32>
    %74 = tpu.matmul %72, %73, %cst_56 {dimension_numbers = #tpu.dot_dimension_numbers<[1], [0], [0], [1], [0, 0, 1, 1], [], []>} : vector<8x256xbf16>, vector<256x1024xbf16>, vector<8x1024xf32> -> vector<8x1024xf32>
    %c0_57 = arith.constant 0 : index
    %c0_58 = arith.constant 0 : index
    %75 = vector.load %arg20[%c0_57, %c0_58] : memref<1x1024xf32, #tpu.memory_space<vmem>>, vector<1x1024xf32>
    %76 = vector.broadcast %75 : vector<1x1024xf32> to vector<8x1024xf32>
    %77 = arith.addf %74, %76 : vector<8x1024xf32>
    %cst_59 = arith.constant 0.000000e+00 : f32
    %78 = vector.broadcast %cst_59 : f32 to vector<8x1024xf32>
    %79 = arith.maximumf %77, %78 : vector<8x1024xf32>
    %c0_60 = arith.constant 0 : index
    %c0_61 = arith.constant 0 : index
    %80 = vector.load %arg21[%c0_60, %c0_61] : memref<8x1024xf32, #tpu.memory_space<vmem>>, vector<8x1024xf32>
    tpu.vector_store %arg21[%c0_60, %c0_61], %79 {strides = array<i32>} : memref<8x1024xf32, #tpu.memory_space<vmem>>, vector<8x1024xf32>,
    return
  }
}

</mosaic_0001>

<llo_original>
// kernel: tpu_custom_call.1
$region0: #{tpu_custom_call.1}
  #allocation0 [shape = 'u32[]', space=smem, size = 0x4, offset = 0x4, fixed_abs, tag = 'smem constant byte address 0x4 - core index']
  #allocation1 [shape = 'u32[72,128]{1,0:T(1,128)}', space=vmem, size = 0x9000, scoped, tag = 'internal scratch']
  %s0 = inlined_call_operand.vmem [shape: bf16[8,1024], index: 0, kind: input, shape index: {}]
  %s1 = inlined_call_operand.hbm [shape: bf16[1024,256], index: 1, kind: input, shape index: {}]
  %s2 = inlined_call_operand.vmem [shape: bf16[256,128], index: 2, kind: input, shape index: {}]
  %s3 = inlined_call_operand.vmem [shape: bf16[128,64], index: 3, kind: input, shape index: {}]
  %s4 = inlined_call_operand.vmem [shape: bf16[64,32], index: 4, kind: input, shape index: {}]
  %s5 = inlined_call_operand.vmem [shape: bf16[32,16], index: 5, kind: input, shape index: {}]
  %s6 = inlined_call_operand.vmem [shape: bf16[16,32], index: 6, kind: input, shape index: {}]
  %s7 = inlined_call_operand.hbm [shape: bf16[32,64], index: 7, kind: input, shape index: {}]
  %s8 = inlined_call_operand.hbm [shape: bf16[64,128], index: 8, kind: input, shape index: {}]
  %s9 = inlined_call_operand.hbm [shape: bf16[128,256], index: 9, kind: input, shape index: {}]
  %s10 = inlined_call_operand.hbm [shape: bf16[256,1024], index: 10, kind: input, shape index: {}]
  %s11 = inlined_call_operand.hbm [shape: f32[1,256], index: 11, kind: input, shape index: {}]
  %s12 = inlined_call_operand.vmem [shape: f32[1,128], index: 12, kind: input, shape index: {}]
  %s13 = inlined_call_operand.hbm [shape: f32[1,64], index: 13, kind: input, shape index: {}]
  %s14 = inlined_call_operand.vmem [shape: f32[1,32], index: 14, kind: input, shape index: {}]
  %s15 = inlined_call_operand.vmem [shape: f32[1,16], index: 15, kind: input, shape index: {}]
  %s16 = inlined_call_operand.vmem [shape: f32[1,32], index: 16, kind: input, shape index: {}]
  %s17 = inlined_call_operand.vmem [shape: f32[1,64], index: 17, kind: input, shape index: {}]
  %s18 = inlined_call_operand.vmem [shape: f32[1,128], index: 18, kind: input, shape index: {}]
  %s19 = inlined_call_operand.vmem [shape: f32[1,256], index: 19, kind: input, shape index: {}]
  %s20 = inlined_call_operand.vmem [shape: f32[1,1024], index: 20, kind: input, shape index: {}]
  %s21 = inlined_call_operand.hbm [shape: f32[8,1024], index: 21, kind: output, shape index: {}]
  %s22 = sld [smem:[#allocation0]]
  $region122: #{tpu_custom_call.1} parent=0
    _
  %s24 = ssub.s32 1, %s22
  %s25 = scalar_select 0, %s24, %s22
  $region1: #{tpu_custom_call.1} parent=0
    #allocation2 [shape = 'u8[524288]{0}', space=vmem, size = 0x80000, scoped, tag = 'input window, operand 1, single buffered']
    #allocation3 [shape = 's32[1]{0}', space=sflag, size = 0x4, scoped, tag = 'scoped memory for tpu_custom_call.1']
    #allocation4 [shape = 's32[1]{0}', space=sflag, size = 0x4, scoped, tag = 'scoped memory for tpu_custom_call.1']
    #allocation5 [shape = 'u8[8192]{0}', space=vmem, size = 0x2000, scoped, tag = 'input window, operand 7, single buffered']
    #allocation6 [shape = 's32[1]{0}', space=sflag, size = 0x4, scoped, tag = 'scoped memory for tpu_custom_call.1']
    #allocation7 [shape = 'u8[16384]{0}', space=vmem, size = 0x4000, scoped, tag = 'input window, operand 8, single buffered']
    #allocation8 [shape = 'u8[65536]{0}', space=vmem, size = 0x10000, scoped, tag = 'input window, operand 9, single buffered']
    #allocation9 [shape = 's32[1]{0}', space=sflag, size = 0x4, scoped, tag = 'scoped memory for tpu_custom_call.1']
    #allocation10 [shape = 'u8[524288]{0}', space=vmem, size = 0x80000, scoped, tag = 'input window, operand 10, single buffered']
    #allocation11 [shape = 'u8[1024]{0}', space=vmem, size = 0x400, scoped, tag = 'input window, operand 11, single buffered']
    #allocation12 [shape = 's32[1]{0}', space=sflag, size = 0x4, scoped, tag = 'scoped memory for tpu_custom_call.1']
    #allocation13 [shape = 'u8[512]{0}', space=vmem, size = 0x400, scoped, tag = 'input window, operand 13, single buffered']
    #allocation14 [shape = 'u8[32768]{0}', space=vmem, size = 0x8000, scoped, tag = 'output window, operand 0, single buffered']
    %26 = vsyncpa [#allocation3], 0
    %27 = vsyncpa [#allocation6], 0
    %28 = vsyncpa [#allocation9], 0
    %29 = vsyncpa [#allocation12], 0
    %30 = vsyncpa [#allocation4], 0
    // Predicated region
    $region2: #{tpu_custom_call.1} parent=1 // pred_check
      _
    $region3: #{tpu_custom_call.1} parent=1 // pred_check_branch
      %32 = sbr.rel (0) target = $region5
    $region4: #{tpu_custom_call.1} parent=1 // pred_region
      _
    $region5: #{tpu_custom_call.1} parent=1 // pred_fallthru
      _
    // Predicated region
    $region6: #{tpu_custom_call.1} parent=1 // pred_check
      _
    $region7: #{tpu_custom_call.1} parent=1 // pred_check_branch
      %34 = sbr.rel (0) target = $region9
    $region8: #{tpu_custom_call.1} parent=1 // pred_region
      %36 = vsyncadd [#allocation3], 0
      %s37 = sshll.u32 %s1, 4
      %s38 = int_to_ptr.hbm [resolvable:$true] %s37
      %s39 = sshll.u32 [#allocation2], 4
      %s40 = int_to_ptr.vmem [resolvable:$true] %s39
      %45 = dma.hbm_to_vmem [thread:$0]  %s38, 16384, %s40, [#allocation3], 128, 128, 8
    $region9: #{tpu_custom_call.1} parent=1 // pred_fallthru
      _
    // Predicated region
    $region10: #{tpu_custom_call.1} parent=1 // pred_check
      _
    $region11: #{tpu_custom_call.1} parent=1 // pred_check_branch
      %47 = sbr.rel (0) target = $region13
    $region12: #{tpu_custom_call.1} parent=1 // pred_region
      _
    $region13: #{tpu_custom_call.1} parent=1 // pred_fallthru
      _
    // Predicated region
    $region14: #{tpu_custom_call.1} parent=1 // pred_check
      _
    $region15: #{tpu_custom_call.1} parent=1 // pred_check_branch
      %49 = sbr.rel (0) target = $region17
    $region16: #{tpu_custom_call.1} parent=1 // pred_region
      _
    $region17: #{tpu_custom_call.1} parent=1 // pred_fallthru
      _
    // Predicated region
    $region18: #{tpu_custom_call.1} parent=1 // pred_check
      _
    $region19: #{tpu_custom_call.1} parent=1 // pred_check_branch
      %51 = sbr.rel (0) target = $region21
    $region20: #{tpu_custom_call.1} parent=1 // pred_region
      _
    $region21: #{tpu_custom_call.1} parent=1 // pred_fallthru
      _
    // Predicated region
    $region22: #{tpu_custom_call.1} parent=1 // pred_check
      _
    $region23: #{tpu_custom_call.1} parent=1 // pred_check_branch
      %53 = sbr.rel (0) target = $region25
    $region24: #{tpu_custom_call.1} parent=1 // pred_region
      _
    $region25: #{tpu_custom_call.1} parent=1 // pred_fallthru
      _
    // Predicated region
    $region26: #{tpu_custom_call.1} parent=1 // pred_check
      _
    $region27: #{tpu_custom_call.1} parent=1 // pred_check_branch
      %55 = sbr.rel (0) target = $region29
    $region28: #{tpu_custom_call.1} parent=1 // pred_region
      _
    $region29: #{tpu_custom_call.1} parent=1 // pred_fallthru
      _
    // Predicated region
    $region30: #{tpu_custom_call.1} parent=1 // pred_check
      _
    $region31: #{tpu_custom_call.1} parent=1 // pred_check_branch
      %57 = sbr.rel (0) target = $region33
    $region32: #{tpu_custom_call.1} parent=1 // pred_region
      %59 = vsyncadd [#allocation6], 0
      %s60 = sshll.u32 %s7, 4
      %s61 = int_to_ptr.hbm [resolvable:$true] %s60
      %s62 = sshll.u32 [#allocation5], 4
      %s63 = int_to_ptr.vmem [resolvable:$true] %s62
      %68 = dma.hbm_to_vmem [thread:$0]  %s61, 256, %s63, [#allocation6], 64, 64, 4
    $region33: #{tpu_custom_call.1} parent=1 // pred_fallthru
      _
    // Predicated region
    $region34: #{tpu_custom_call.1} parent=1 // pred_check
      _
    $region35: #{tpu_custom_call.1} parent=1 // pred_check_branch
      %70 = sbr.rel (0) target = $region37
    $region36: #{tpu_custom_call.1} parent=1 // pred_region
      %72 = vsyncadd [#allocation6], 0
      %s73 = sshll.u32 %s8, 4
      %s74 = int_to_ptr.hbm [resolvable:$true] %s73
      %s75 = sshll.u32 [#allocation7], 4
      %s76 = int_to_ptr.vmem [resolvable:$true] %s75
      %81 = dma.hbm_to_vmem [thread:$0]  %s74, 512, %s76, [#allocation6], 64, 64, 4
    $region37: #{tpu_custom_call.1} parent=1 // pred_fallthru
      _
    // Predicated region
    $region38: #{tpu_custom_call.1} parent=1 // pred_check
      _
    $region39: #{tpu_custom_call.1} parent=1 // pred_check_branch
      %83 = sbr.rel (0) target = $region41
    $region40: #{tpu_custom_call.1} parent=1 // pred_region
      %85 = vsyncadd [#allocation9], 0
      %s86 = sshll.u32 %s9, 4
      %s87 = int_to_ptr.hbm [resolvable:$true] %s86
      %s88 = sshll.u32 [#allocation8], 4
      %s89 = int_to_ptr.vmem [resolvable:$true] %s88
      %94 = dma.hbm_to_vmem [thread:$0]  %s87, 2048, %s89, [#allocation9], 128, 128, 8
    $region41: #{tpu_custom_call.1} parent=1 // pred_fallthru
      _
    // Predicated region
    $region42: #{tpu_custom_call.1} parent=1 // pred_check
      _
    $region43: #{tpu_custom_call.1} parent=1 // pred_check_branch
      %96 = sbr.rel (0) target = $region45
    $region44: #{tpu_custom_call.1} parent=1 // pred_region
      %98 = vsyncadd [#allocation9], 0
      %s99 = sshll.u32 %s10, 4
      %s100 = int_to_ptr.hbm [resolvable:$true] %s99
      %s101 = sshll.u32 [#allocation10], 4
      %s102 = int_to_ptr.vmem [resolvable:$true] %s101
      %107 = dma.hbm_to_vmem [thread:$0]  %s100, 16384, %s102, [#allocation9], 512, 512, 32
    $region45: #{tpu_custom_call.1} parent=1 // pred_fallthru
      _
    // Predicated region
    $region46: #{tpu_custom_call.1} parent=1 // pred_check
      _
    $region47: #{tpu_custom_call.1} parent=1 // pred_check_branch
      %109 = sbr.rel (0) target = $region49
    $region48: #{tpu_custom_call.1} parent=1 // pred_region
      %111 = vsyncadd [#allocation12], 0
      %s113 = sshll.u32 %s11, 4
      %s114 = int_to_ptr.hbm [resolvable:$true] %s113
      %s115 = sshll.u32 [#allocation11], 4
      %s116 = int_to_ptr.vmem [resolvable:$true] %s115
      %118 = dma.hbm_to_vmem [thread:$0]  %s114, 32, %s116, [#allocation12]
    $region49: #{tpu_custom_call.1} parent=1 // pred_fallthru
      _
    // Predicated region
    $region50: #{tpu_custom_call.1} parent=1 // pred_check
      _
    $region51: #{tpu_custom_call.1} parent=1 // pred_check_branch
      %120 = sbr.rel (0) target = $region53
    $region52: #{tpu_custom_call.1} parent=1 // pred_region
      _
    $region53: #{tpu_custom_call.1} parent=1 // pred_fallthru
      _
    // Predicated region
    $region54: #{tpu_custom_call.1} parent=1 // pred_check
      _
    $region55: #{tpu_custom_call.1} parent=1 // pred_check_branch
      %122 = sbr.rel (0) target = $region57
    $region56: #{tpu_custom_call.1} parent=1 // pred_region
      %124 = vsyncadd [#allocation12], 0
      %s126 = sshll.u32 %s13, 4
      %s127 = int_to_ptr.hbm [resolvable:$true] %s126
      %s128 = sshll.u32 [#allocation13], 4
      %s129 = int_to_ptr.vmem [resolvable:$true] %s128
      %131 = dma.hbm_to_vmem [thread:$0]  %s127, 16, %s129, [#allocation12]
    $region57: #{tpu_custom_call.1} parent=1 // pred_fallthru
      _
    // Predicated region
    $region58: #{tpu_custom_call.1} parent=1 // pred_check
      _
    $region59: #{tpu_custom_call.1} parent=1 // pred_check_branch
      %133 = sbr.rel (0) target = $region61
    $region60: #{tpu_custom_call.1} parent=1 // pred_region
      _
    $region61: #{tpu_custom_call.1} parent=1 // pred_fallthru
      _
    // Predicated region
    $region62: #{tpu_custom_call.1} parent=1 // pred_check
      _
    $region63: #{tpu_custom_call.1} parent=1 // pred_check_branch
      %135 = sbr.rel (0) target = $region65
    $region64: #{tpu_custom_call.1} parent=1 // pred_region
      _
    $region65: #{tpu_custom_call.1} parent=1 // pred_fallthru
      _
    // Predicated region
    $region66: #{tpu_custom_call.1} parent=1 // pred_check
      _
    $region67: #{tpu_custom_call.1} parent=1 // pred_check_branch
      %137 = sbr.rel (0) target = $region69
    $region68: #{tpu_custom_call.1} parent=1 // pred_region
      _
    $region69: #{tpu_custom_call.1} parent=1 // pred_fallthru
      _
    // Predicated region
    $region70: #{tpu_custom_call.1} parent=1 // pred_check
      _
    $region71: #{tpu_custom_call.1} parent=1 // pred_check_branch
      %139 = sbr.rel (0) target = $region73
    $region72: #{tpu_custom_call.1} parent=1 // pred_region
      _
    $region73: #{tpu_custom_call.1} parent=1 // pred_fallthru
      _
    // Predicated region
    $region74: #{tpu_custom_call.1} parent=1 // pred_check
      _
    $region75: #{tpu_custom_call.1} parent=1 // pred_check_branch
      %141 = sbr.rel (0) target = $region77
    $region76: #{tpu_custom_call.1} parent=1 // pred_region
      _
    $region77: #{tpu_custom_call.1} parent=1 // pred_fallthru
      _
    // Predicated region
    $region78: #{tpu_custom_call.1} parent=1 // pred_check
      _
    $region79: #{tpu_custom_call.1} parent=1 // pred_check_branch
      %143 = sbr.rel (0) target = $region81
    $region80: #{tpu_custom_call.1} parent=1 // pred_region
      _
    $region81: #{tpu_custom_call.1} parent=1 // pred_fallthru
      _
    // Predicated region
    $region82: #{tpu_custom_call.1} parent=1 // pred_check
      _
    $region83: #{tpu_custom_call.1} parent=1 // pred_check_branch
      %145 = sbr.rel (0) target = $region85
    $region84: #{tpu_custom_call.1} parent=1 // pred_region
      _
    $region85: #{tpu_custom_call.1} parent=1 // pred_fallthru
      _
    // Predicated region
    $region86: #{tpu_custom_call.1} parent=1 // pred_check
      _
    $region87: #{tpu_custom_call.1} parent=1 // pred_check_branch
      %147 = sbr.rel (0) target = $region89
    $region88: #{tpu_custom_call.1} parent=1 // pred_region
      %149 = dma.done [#allocation3], 16384
    $region89: #{tpu_custom_call.1} parent=1 // pred_fallthru
      _
    // Predicated region
    $region90: #{tpu_custom_call.1} parent=1 // pred_check
      _
    $region91: #{tpu_custom_call.1} parent=1 // pred_check_branch
      %151 = sbr.rel (0) target = $region93
    $region92: #{tpu_custom_call.1} parent=1 // pred_region
      %153 = dma.done [#allocation6], 256
    $region93: #{tpu_custom_call.1} parent=1 // pred_fallthru
      _
    // Predicated region
    $region94: #{tpu_custom_call.1} parent=1 // pred_check
      _
    $region95: #{tpu_custom_call.1} parent=1 // pred_check_branch
      %155 = sbr.rel (0) target = $region97
    $region96: #{tpu_custom_call.1} parent=1 // pred_region
      %157 = dma.done [#allocation6], 512
    $region97: #{tpu_custom_call.1} parent=1 // pred_fallthru
      _
    // Predicated region
    $region98: #{tpu_custom_call.1} parent=1 // pred_check
      _
    $region99: #{tpu_custom_call.1} parent=1 // pred_check_branch
      %159 = sbr.rel (0) target = $region101
    $region100: #{tpu_custom_call.1} parent=1 // pred_region
      %161 = dma.done [#allocation9], 2048
    $region101: #{tpu_custom_call.1} parent=1 // pred_fallthru
      _
    // Predicated region
    $region102: #{tpu_custom_call.1} parent=1 // pred_check
      _
    $region103: #{tpu_custom_call.1} parent=1 // pred_check_branch
      %163 = sbr.rel (0) target = $region105
    $region104: #{tpu_custom_call.1} parent=1 // pred_region
      %165 = dma.done [#allocation9], 16384
    $region105: #{tpu_custom_call.1} parent=1 // pred_fallthru
      _
    // Predicated region
    $region106: #{tpu_custom_call.1} parent=1 // pred_check
      _
    $region107: #{tpu_custom_call.1} parent=1 // pred_check_branch
      %167 = sbr.rel (0) target = $region109
    $region108: #{tpu_custom_call.1} parent=1 // pred_region
      %169 = dma.done [#allocation12], 32
    $region109: #{tpu_custom_call.1} parent=1 // pred_fallthru
      _
    // Predicated region
    $region110: #{tpu_custom_call.1} parent=1 // pred_check
      _
    $region111: #{tpu_custom_call.1} parent=1 // pred_check_branch
      %171 = sbr.rel (0) target = $region113
    $region112: #{tpu_custom_call.1} parent=1 // pred_region
      %173 = dma.done [#allocation12], 16
    $region113: #{tpu_custom_call.1} parent=1 // pred_fallthru
      _
    %v175 = vld [vmem:[%s0] sm:$0xff]
    %v176 = vld [vmem:[%s0 + $0x8] sm:$0xff]
    %v177 = vld [vmem:[%s0 + $0x10] sm:$0xff]
    %v178 = vld [vmem:[%s0 + $0x18] sm:$0xff]
    %v179 = vld [vmem:[#allocation2] sm:$0xff]
    %v180 = vld [vmem:[#allocation2 + $0x8] sm:$0xff]
    %v181 = vld [vmem:[#allocation2 + $0x10] sm:$0xff]
    %v182 = vld [vmem:[#allocation2 + $0x18] sm:$0xff]
    %v183 = vld [vmem:[#allocation2 + $0x20] sm:$0xff]
    %v184 = vld [vmem:[#allocation2 + $0x28] sm:$0xff]
    %v185 = vld [vmem:[#allocation2 + $0x30] sm:$0xff]
    %v186 = vld [vmem:[#allocation2 + $0x38] sm:$0xff]
    %v187 = vld [vmem:[#allocation2 + $0x40] sm:$0xff]
    %v188 = vld [vmem:[#allocation2 + $0x48] sm:$0xff]
    %v189 = vld [vmem:[#allocation2 + $0x50] sm:$0xff]
    %v190 = vld [vmem:[#allocation2 + $0x58] sm:$0xff]
    %v191 = vld [vmem:[#allocation2 + $0x60] sm:$0xff]
    %v192 = vld [vmem:[#allocation2 + $0x68] sm:$0xff]
    %v193 = vld [vmem:[#allocation2 + $0x70] sm:$0xff]
    %v194 = vld [vmem:[#allocation2 + $0x78] sm:$0xff]
    %v195 = vld [vmem:[#allocation2 + $0x80] sm:$0xff]
    %v196 = vld [vmem:[#allocation2 + $0x88] sm:$0xff]
    %v197 = vld [vmem:[#allocation2 + $0x90] sm:$0xff]
    %v198 = vld [vmem:[#allocation2 + $0x98] sm:$0xff]
    %v199 = vld [vmem:[#allocation2 + $0xa0] sm:$0xff]
    %v200 = vld [vmem:[#allocation2 + $0xa8] sm:$0xff]
    %v201 = vld [vmem:[#allocation2 + $0xb0] sm:$0xff]
    %v202 = vld [vmem:[#allocation2 + $0xb8] sm:$0xff]
    %v203 = vld [vmem:[#allocation2 + $0xc0] sm:$0xff]
    %v204 = vld [vmem:[#allocation2 + $0xc8] sm:$0xff]
    %v205 = vld [vmem:[#allocation2 + $0xd0] sm:$0xff]
    %v206 = vld [vmem:[#allocation2 + $0xd8] sm:$0xff]
    %v207 = vld [vmem:[#allocation2 + $0xe0] sm:$0xff]
    %v208 = vld [vmem:[#allocation2 + $0xe8] sm:$0xff]
    %v209 = vld [vmem:[#allocation2 + $0xf0] sm:$0xff]
    %v210 = vld [vmem:[#allocation2 + $0xf8] sm:$0xff]
    %v211 = vld [vmem:[#allocation2 + $0x100] sm:$0xff]
    %v212 = vld [vmem:[#allocation2 + $0x108] sm:$0xff]
    %v213 = vld [vmem:[#allocation2 + $0x110] sm:$0xff]
    %v214 = vld [vmem:[#allocation2 + $0x118] sm:$0xff]
    %v215 = vld [vmem:[#allocation2 + $0x120] sm:$0xff]
    %v216 = vld [vmem:[#allocation2 + $0x128] sm:$0xff]
    %v217 = vld [vmem:[#allocation2 + $0x130] sm:$0xff]
    %v218 = vld [vmem:[#allocation2 + $0x138] sm:$0xff]
    %v219 = vld [vmem:[#allocation2 + $0x140] sm:$0xff]
    %v220 = vld [vmem:[#allocation2 + $0x148] sm:$0xff]
    %v221 = vld [vmem:[#allocation2 + $0x150] sm:$0xff]
    %v222 = vld [vmem:[#allocation2 + $0x158] sm:$0xff]
    %v223 = vld [vmem:[#allocation2 + $0x160] sm:$0xff]
    %v224 = vld [vmem:[#allocation2 + $0x168] sm:$0xff]
    %v225 = vld [vmem:[#allocation2 + $0x170] sm:$0xff]
    %v226 = vld [vmem:[#allocation2 + $0x178] sm:$0xff]
    %v227 = vld [vmem:[#allocation2 + $0x180] sm:$0xff]
    %v228 = vld [vmem:[#allocation2 + $0x188] sm:$0xff]
    %v229 = vld [vmem:[#allocation2 + $0x190] sm:$0xff]
    %v230 = vld [vmem:[#allocation2 + $0x198] sm:$0xff]
    %v231 = vld [vmem:[#allocation2 + $0x1a0] sm:$0xff]
    %v232 = vld [vmem:[#allocation2 + $0x1a8] sm:$0xff]
    %v233 = vld [vmem:[#allocation2 + $0x1b0] sm:$0xff]
    %v234 = vld [vmem:[#allocation2 + $0x1b8] sm:$0xff]
    %v235 = vld [vmem:[#allocation2 + $0x1c0] sm:$0xff]
    %v236 = vld [vmem:[#allocation2 + $0x1c8] sm:$0xff]
    %v237 = vld [vmem:[#allocation2 + $0x1d0] sm:$0xff]
    %v238 = vld [vmem:[#allocation2 + $0x1d8] sm:$0xff]
    %v239 = vld [vmem:[#allocation2 + $0x1e0] sm:$0xff]
    %v240 = vld [vmem:[#allocation2 + $0x1e8] sm:$0xff]
    %v241 = vld [vmem:[#allocation2 + $0x1f0] sm:$0xff]
    %v242 = vld [vmem:[#allocation2 + $0x1f8] sm:$0xff]
    %v243 = vld [vmem:[#allocation2 + $0x200] sm:$0xff]
    %v244 = vld [vmem:[#allocation2 + $0x208] sm:$0xff]
    %v245 = vld [vmem:[#allocation2 + $0x210] sm:$0xff]
    %v246 = vld [vmem:[#allocation2 + $0x218] sm:$0xff]
    %v247 = vld [vmem:[#allocation2 + $0x220] sm:$0xff]
    %v248 = vld [vmem:[#allocation2 + $0x228] sm:$0xff]
    %v249 = vld [vmem:[#allocation2 + $0x230] sm:$0xff]
    %v250 = vld [vmem:[#allocation2 + $0x238] sm:$0xff]
    %v251 = vld [vmem:[#allocation2 + $0x240] sm:$0xff]
    %v252 = vld [vmem:[#allocation2 + $0x248] sm:$0xff]
    %v253 = vld [vmem:[#allocation2 + $0x250] sm:$0xff]
    %v254 = vld [vmem:[#allocation2 + $0x258] sm:$0xff]
    %v255 = vld [vmem:[#allocation2 + $0x260] sm:$0xff]
    %v256 = vld [vmem:[#allocation2 + $0x268] sm:$0xff]
    %v257 = vld [vmem:[#allocation2 + $0x270] sm:$0xff]
    %v258 = vld [vmem:[#allocation2 + $0x278] sm:$0xff]
    %v259 = vld [vmem:[#allocation2 + $0x280] sm:$0xff]
    %v260 = vld [vmem:[#allocation2 + $0x288] sm:$0xff]
    %v261 = vld [vmem:[#allocation2 + $0x290] sm:$0xff]
    %v262 = vld [vmem:[#allocation2 + $0x298] sm:$0xff]
    %v263 = vld [vmem:[#allocation2 + $0x2a0] sm:$0xff]
    %v264 = vld [vmem:[#allocation2 + $0x2a8] sm:$0xff]
    %v265 = vld [vmem:[#allocation2 + $0x2b0] sm:$0xff]
    %v266 = vld [vmem:[#allocation2 + $0x2b8] sm:$0xff]
    %v267 = vld [vmem:[#allocation2 + $0x2c0] sm:$0xff]
    %v268 = vld [vmem:[#allocation2 + $0x2c8] sm:$0xff]
    %v269 = vld [vmem:[#allocation2 + $0x2d0] sm:$0xff]
    %v270 = vld [vmem:[#allocation2 + $0x2d8] sm:$0xff]
    %v271 = vld [vmem:[#allocation2 + $0x2e0] sm:$0xff]
    %v272 = vld [vmem:[#allocation2 + $0x2e8] sm:$0xff]
    %v273 = vld [vmem:[#allocation2 + $0x2f0] sm:$0xff]
    %v274 = vld [vmem:[#allocation2 + $0x2f8] sm:$0xff]
    %v275 = vld [vmem:[#allocation2 + $0x300] sm:$0xff]
    %v276 = vld [vmem:[#allocation2 + $0x308] sm:$0xff]
    %v277 = vld [vmem:[#allocation2 + $0x310] sm:$0xff]
    %v278 = vld [vmem:[#allocation2 + $0x318] sm:$0xff]
    %v279 = vld [vmem:[#allocation2 + $0x320] sm:$0xff]
    %v280 = vld [vmem:[#allocation2 + $0x328] sm:$0xff]
    %v281 = vld [vmem:[#allocation2 + $0x330] sm:$0xff]
    %v282 = vld [vmem:[#allocation2 + $0x338] sm:$0xff]
    %v283 = vld [vmem:[#allocation2 + $0x340] sm:$0xff]
    %v284 = vld [vmem:[#allocation2 + $0x348] sm:$0xff]
    %v285 = vld [vmem:[#allocation2 + $0x350] sm:$0xff]
    %v286 = vld [vmem:[#allocation2 + $0x358] sm:$0xff]
    %v287 = vld [vmem:[#allocation2 + $0x360] sm:$0xff]
    %v288 = vld [vmem:[#allocation2 + $0x368] sm:$0xff]
    %v289 = vld [vmem:[#allocation2 + $0x370] sm:$0xff]
    %v290 = vld [vmem:[#allocation2 + $0x378] sm:$0xff]
    %v291 = vld [vmem:[#allocation2 + $0x380] sm:$0xff]
    %v292 = vld [vmem:[#allocation2 + $0x388] sm:$0xff]
    %v293 = vld [vmem:[#allocation2 + $0x390] sm:$0xff]
    %v294 = vld [vmem:[#allocation2 + $0x398] sm:$0xff]
    %v295 = vld [vmem:[#allocation2 + $0x3a0] sm:$0xff]
    %v296 = vld [vmem:[#allocation2 + $0x3a8] sm:$0xff]
    %v297 = vld [vmem:[#allocation2 + $0x3b0] sm:$0xff]
    %v298 = vld [vmem:[#allocation2 + $0x3b8] sm:$0xff]
    %v299 = vld [vmem:[#allocation2 + $0x3c0] sm:$0xff]
    %v300 = vld [vmem:[#allocation2 + $0x3c8] sm:$0xff]
    %v301 = vld [vmem:[#allocation2 + $0x3d0] sm:$0xff]
    %v302 = vld [vmem:[#allocation2 + $0x3d8] sm:$0xff]
    %v303 = vld [vmem:[#allocation2 + $0x3e0] sm:$0xff]
    %v304 = vld [vmem:[#allocation2 + $0x3e8] sm:$0xff]
    %v305 = vld [vmem:[#allocation2 + $0x3f0] sm:$0xff]
    %v306 = vld [vmem:[#allocation2 + $0x3f8] sm:$0xff]
    %v307 = vld [vmem:[#allocation11] sm:$0x3]
    %v309 = vperm.slane %v307, 0
    %v310 = vperm.slane %v307, 1
    %v317 = vunpack.c.l.b16 %v175
    %v318 = vunpack.c.h.b16 %v175
    %v319 = vunpack.c.l.b16 %v176
    %v320 = vunpack.c.h.b16 %v176
    %v321 = vunpack.c.l.b16 %v177
    %v322 = vunpack.c.h.b16 %v177
    %v323 = vunpack.c.l.b16 %v178
    %v324 = vunpack.c.h.b16 %v178
    %v325 = vpack.c.b16 %v317, %v317
    %v326 = vpack.c.b16 %v318, %v318
    %v327 = vpack.c.b16 %v319, %v319
    %v328 = vpack.c.b16 %v320, %v320
    %v329 = vpack.c.b16 %v321, %v321
    %v330 = vpack.c.b16 %v322, %v322
    %v331 = vpack.c.b16 %v323, %v323
    %v332 = vpack.c.b16 %v324, %v324
    %v469 = vunpack.c.l.b16 %v179
    %v470 = vunpack.c.h.b16 %v179
    %v471 = vunpack.c.l.b16 %v180
    %v472 = vunpack.c.h.b16 %v180
    %v473 = vunpack.c.l.b16 %v181
    %v474 = vunpack.c.h.b16 %v181
    %v475 = vunpack.c.l.b16 %v182
    %v476 = vunpack.c.h.b16 %v182
    %v477 = vunpack.c.l.b16 %v183
    %v478 = vunpack.c.h.b16 %v183
    %v479 = vunpack.c.l.b16 %v184
    %v480 = vunpack.c.h.b16 %v184
    %v481 = vunpack.c.l.b16 %v185
    %v482 = vunpack.c.h.b16 %v185
    %v483 = vunpack.c.l.b16 %v186
    %v484 = vunpack.c.h.b16 %v186
    %v485 = vunpack.c.l.b16 %v187
    %v486 = vunpack.c.h.b16 %v187
    %v487 = vunpack.c.l.b16 %v188
    %v488 = vunpack.c.h.b16 %v188
    %v489 = vunpack.c.l.b16 %v189
    %v490 = vunpack.c.h.b16 %v189
    %v491 = vunpack.c.l.b16 %v190
    %v492 = vunpack.c.h.b16 %v190
    %v493 = vunpack.c.l.b16 %v191
    %v494 = vunpack.c.h.b16 %v191
    %v495 = vunpack.c.l.b16 %v192
    %v496 = vunpack.c.h.b16 %v192
    %v497 = vunpack.c.l.b16 %v193
    %v498 = vunpack.c.h.b16 %v193
    %v499 = vunpack.c.l.b16 %v194
    %v500 = vunpack.c.h.b16 %v194
    %v501 = vunpack.c.l.b16 %v195
    %v502 = vunpack.c.h.b16 %v195
    %v503 = vunpack.c.l.b16 %v196
    %v504 = vunpack.c.h.b16 %v196
    %v505 = vunpack.c.l.b16 %v197
    %v506 = vunpack.c.h.b16 %v197
    %v507 = vunpack.c.l.b16 %v198
    %v508 = vunpack.c.h.b16 %v198
    %v509 = vunpack.c.l.b16 %v199
    %v510 = vunpack.c.h.b16 %v199
    %v511 = vunpack.c.l.b16 %v200
    %v512 = vunpack.c.h.b16 %v200
    %v513 = vunpack.c.l.b16 %v201
    %v514 = vunpack.c.h.b16 %v201
    %v515 = vunpack.c.l.b16 %v202
    %v516 = vunpack.c.h.b16 %v202
    %v517 = vunpack.c.l.b16 %v203
    %v518 = vunpack.c.h.b16 %v203
    %v519 = vunpack.c.l.b16 %v204
    %v520 = vunpack.c.h.b16 %v204
    %v521 = vunpack.c.l.b16 %v205
    %v522 = vunpack.c.h.b16 %v205
    %v523 = vunpack.c.l.b16 %v206
    %v524 = vunpack.c.h.b16 %v206
    %v525 = vunpack.c.l.b16 %v207
    %v526 = vunpack.c.h.b16 %v207
    %v527 = vunpack.c.l.b16 %v208
    %v528 = vunpack.c.h.b16 %v208
    %v529 = vunpack.c.l.b16 %v209
    %v530 = vunpack.c.h.b16 %v209
    %v531 = vunpack.c.l.b16 %v210
    %v532 = vunpack.c.h.b16 %v210
    %v533 = vunpack.c.l.b16 %v211
    %v534 = vunpack.c.h.b16 %v211
    %v535 = vunpack.c.l.b16 %v212
    %v536 = vunpack.c.h.b16 %v212
    %v537 = vunpack.c.l.b16 %v213
    %v538 = vunpack.c.h.b16 %v213
    %v539 = vunpack.c.l.b16 %v214
    %v540 = vunpack.c.h.b16 %v214
    %v541 = vunpack.c.l.b16 %v215
    %v542 = vunpack.c.h.b16 %v215
    %v543 = vunpack.c.l.b16 %v216
    %v544 = vunpack.c.h.b16 %v216
    %v545 = vunpack.c.l.b16 %v217
    %v546 = vunpack.c.h.b16 %v217
    %v547 = vunpack.c.l.b16 %v218
    %v548 = vunpack.c.h.b16 %v218
    %v549 = vunpack.c.l.b16 %v219
    %v550 = vunpack.c.h.b16 %v219
    %v551 = vunpack.c.l.b16 %v220
    %v552 = vunpack.c.h.b16 %v220
    %v553 = vunpack.c.l.b16 %v221
    %v554 = vunpack.c.h.b16 %v221
    %v555 = vunpack.c.l.b16 %v222
    %v556 = vunpack.c.h.b16 %v222
    %v557 = vunpack.c.l.b16 %v223
    %v558 = vunpack.c.h.b16 %v223
    %v559 = vunpack.c.l.b16 %v224
    %v560 = vunpack.c.h.b16 %v224
    %v561 = vunpack.c.l.b16 %v225
    %v562 = vunpack.c.h.b16 %v225
    %v563 = vunpack.c.l.b16 %v226
    %v564 = vunpack.c.h.b16 %v226
    %v565 = vunpack.c.l.b16 %v227
    %v566 = vunpack.c.h.b16 %v227
    %v567 = vunpack.c.l.b16 %v228
    %v568 = vunpack.c.h.b16 %v228
    %v569 = vunpack.c.l.b16 %v229
    %v570 = vunpack.c.h.b16 %v229
    %v571 = vunpack.c.l.b16 %v230
    %v572 = vunpack.c.h.b16 %v230
    %v573 = vunpack.c.l.b16 %v231
    %v574 = vunpack.c.h.b16 %v231
    %v575 = vunpack.c.l.b16 %v232
    %v576 = vunpack.c.h.b16 %v232
    %v577 = vunpack.c.l.b16 %v233
    %v578 = vunpack.c.h.b16 %v233
    %v579 = vunpack.c.l.b16 %v234
    %v580 = vunpack.c.h.b16 %v234
    %v581 = vunpack.c.l.b16 %v235
    %v582 = vunpack.c.h.b16 %v235
    %v583 = vunpack.c.l.b16 %v236
    %v584 = vunpack.c.h.b16 %v236
    %v585 = vunpack.c.l.b16 %v237
    %v586 = vunpack.c.h.b16 %v237
    %v587 = vunpack.c.l.b16 %v238
    %v588 = vunpack.c.h.b16 %v238
    %v589 = vunpack.c.l.b16 %v239
    %v590 = vunpack.c.h.b16 %v239
    %v591 = vunpack.c.l.b16 %v240
    %v592 = vunpack.c.h.b16 %v240
    %v593 = vunpack.c.l.b16 %v241
    %v594 = vunpack.c.h.b16 %v241
    %v595 = vunpack.c.l.b16 %v242
    %v596 = vunpack.c.h.b16 %v242
    %v597 = vunpack.c.l.b16 %v243
    %v598 = vunpack.c.h.b16 %v243
    %v599 = vunpack.c.l.b16 %v244
    %v600 = vunpack.c.h.b16 %v244
    %v601 = vunpack.c.l.b16 %v245
    %v602 = vunpack.c.h.b16 %v245
    %v603 = vunpack.c.l.b16 %v246
    %v604 = vunpack.c.h.b16 %v246
    %v605 = vunpack.c.l.b16 %v247
    %v606 = vunpack.c.h.b16 %v247
    %v607 = vunpack.c.l.b16 %v248
    %v608 = vunpack.c.h.b16 %v248
    %v609 = vunpack.c.l.b16 %v249
    %v610 = vunpack.c.h.b16 %v249
    %v611 = vunpack.c.l.b16 %v250
    %v612 = vunpack.c.h.b16 %v250
    %v613 = vunpack.c.l.b16 %v251
    %v614 = vunpack.c.h.b16 %v251
    %v615 = vunpack.c.l.b16 %v252
    %v616 = vunpack.c.h.b16 %v252
    %v617 = vunpack.c.l.b16 %v253
    %v618 = vunpack.c.h.b16 %v253
    %v619 = vunpack.c.l.b16 %v254
    %v620 = vunpack.c.h.b16 %v254
    %v621 = vunpack.c.l.b16 %v255
    %v622 = vunpack.c.h.b16 %v255
    %v623 = vunpack.c.l.b16 %v256
    %v624 = vunpack.c.h.b16 %v256
    %v625 = vunpack.c.l.b16 %v257
    %v626 = vunpack.c.h.b16 %v257
    %v627 = vunpack.c.l.b16 %v258
    %v628 = vunpack.c.h.b16 %v258
    %v629 = vunpack.c.l.b16 %v259
    %v630 = vunpack.c.h.b16 %v259
    %v631 = vunpack.c.l.b16 %v260
    %v632 = vunpack.c.h.b16 %v260
    %v633 = vunpack.c.l.b16 %v261
    %v634 = vunpack.c.h.b16 %v261
    %v635 = vunpack.c.l.b16 %v262
    %v636 = vunpack.c.h.b16 %v262
    %v637 = vunpack.c.l.b16 %v263
    %v638 = vunpack.c.h.b16 %v263
    %v639 = vunpack.c.l.b16 %v264
    %v640 = vunpack.c.h.b16 %v264
    %v641 = vunpack.c.l.b16 %v265
    %v642 = vunpack.c.h.b16 %v265
    %v643 = vunpack.c.l.b16 %v266
    %v644 = vunpack.c.h.b16 %v266
    %v645 = vunpack.c.l.b16 %v267
    %v646 = vunpack.c.h.b16 %v267
    %v647 = vunpack.c.l.b16 %v268
    %v648 = vunpack.c.h.b16 %v268
    %v649 = vunpack.c.l.b16 %v269
    %v650 = vunpack.c.h.b16 %v269
    %v651 = vunpack.c.l.b16 %v270
    %v652 = vunpack.c.h.b16 %v270
    %v653 = vunpack.c.l.b16 %v271
    %v654 = vunpack.c.h.b16 %v271
    %v655 = vunpack.c.l.b16 %v272
    %v656 = vunpack.c.h.b16 %v272
    %v657 = vunpack.c.l.b16 %v273
    %v658 = vunpack.c.h.b16 %v273
    %v659 = vunpack.c.l.b16 %v274
    %v660 = vunpack.c.h.b16 %v274
    %v661 = vunpack.c.l.b16 %v275
    %v662 = vunpack.c.h.b16 %v275
    %v663 = vunpack.c.l.b16 %v276
    %v664 = vunpack.c.h.b16 %v276
    %v665 = vunpack.c.l.b16 %v277
    %v666 = vunpack.c.h.b16 %v277
    %v667 = vunpack.c.l.b16 %v278
    %v668 = vunpack.c.h.b16 %v278
    %v669 = vunpack.c.l.b16 %v279
    %v670 = vunpack.c.h.b16 %v279
    %v671 = vunpack.c.l.b16 %v280
    %v672 = vunpack.c.h.b16 %v280
    %v673 = vunpack.c.l.b16 %v281
    %v674 = vunpack.c.h.b16 %v281
    %v675 = vunpack.c.l.b16 %v282
    %v676 = vunpack.c.h.b16 %v282
    %v677 = vunpack.c.l.b16 %v283
    %v678 = vunpack.c.h.b16 %v283
    %v679 = vunpack.c.l.b16 %v284
    %v680 = vunpack.c.h.b16 %v284
    %v681 = vunpack.c.l.b16 %v285
    %v682 = vunpack.c.h.b16 %v285
    %v683 = vunpack.c.l.b16 %v286
    %v684 = vunpack.c.h.b16 %v286
    %v685 = vunpack.c.l.b16 %v287
    %v686 = vunpack.c.h.b16 %v287
    %v687 = vunpack.c.l.b16 %v288
    %v688 = vunpack.c.h.b16 %v288
    %v689 = vunpack.c.l.b16 %v289
    %v690 = vunpack.c.h.b16 %v289
    %v691 = vunpack.c.l.b16 %v290
    %v692 = vunpack.c.h.b16 %v290
    %v693 = vunpack.c.l.b16 %v291
    %v694 = vunpack.c.h.b16 %v291
    %v695 = vunpack.c.l.b16 %v292
    %v696 = vunpack.c.h.b16 %v292
    %v697 = vunpack.c.l.b16 %v293
    %v698 = vunpack.c.h.b16 %v293
    %v699 = vunpack.c.l.b16 %v294
    %v700 = vunpack.c.h.b16 %v294
    %v701 = vunpack.c.l.b16 %v295
    %v702 = vunpack.c.h.b16 %v295
    %v703 = vunpack.c.l.b16 %v296
    %v704 = vunpack.c.h.b16 %v296
    %v705 = vunpack.c.l.b16 %v297
    %v706 = vunpack.c.h.b16 %v297
    %v707 = vunpack.c.l.b16 %v298
    %v708 = vunpack.c.h.b16 %v298
    %v709 = vunpack.c.l.b16 %v299
    %v710 = vunpack.c.h.b16 %v299
    %v711 = vunpack.c.l.b16 %v300
    %v712 = vunpack.c.h.b16 %v300
    %v713 = vunpack.c.l.b16 %v301
    %v714 = vunpack.c.h.b16 %v301
    %v715 = vunpack.c.l.b16 %v302
    %v716 = vunpack.c.h.b16 %v302
    %v717 = vunpack.c.l.b16 %v303
    %v718 = vunpack.c.h.b16 %v303
    %v719 = vunpack.c.l.b16 %v304
    %v720 = vunpack.c.h.b16 %v304
    %v721 = vunpack.c.l.b16 %v305
    %v722 = vunpack.c.h.b16 %v305
    %v723 = vunpack.c.l.b16 %v306
    %v724 = vunpack.c.h.b16 %v306
    %v725 = vpack.c.b16 %v471, %v469
    %v726 = vpack.c.b16 %v472, %v470
    %v727 = vpack.c.b16 %v475, %v473
    %v728 = vpack.c.b16 %v476, %v474
    %v729 = vpack.c.b16 %v479, %v477
    %v730 = vpack.c.b16 %v480, %v478
    %v731 = vpack.c.b16 %v483, %v481
    %v732 = vpack.c.b16 %v484, %v482
    %v733 = vpack.c.b16 %v487, %v485
    %v734 = vpack.c.b16 %v488, %v486
    %v735 = vpack.c.b16 %v491, %v489
    %v736 = vpack.c.b16 %v492, %v490
    %v737 = vpack.c.b16 %v495, %v493
    %v738 = vpack.c.b16 %v496, %v494
    %v739 = vpack.c.b16 %v499, %v497
    %v740 = vpack.c.b16 %v500, %v498
    %v741 = vpack.c.b16 %v503, %v501
    %v742 = vpack.c.b16 %v504, %v502
    %v743 = vpack.c.b16 %v507, %v505
    %v744 = vpack.c.b16 %v508, %v506
    %v745 = vpack.c.b16 %v511, %v509
    %v746 = vpack.c.b16 %v512, %v510
    %v747 = vpack.c.b16 %v515, %v513
    %v748 = vpack.c.b16 %v516, %v514
    %v749 = vpack.c.b16 %v519, %v517
    %v750 = vpack.c.b16 %v520, %v518
    %v751 = vpack.c.b16 %v523, %v521
    %v752 = vpack.c.b16 %v524, %v522
    %v753 = vpack.c.b16 %v527, %v525
    %v754 = vpack.c.b16 %v528, %v526
    %v755 = vpack.c.b16 %v531, %v529
    %v756 = vpack.c.b16 %v532, %v530
    %v757 = vpack.c.b16 %v535, %v533
    %v758 = vpack.c.b16 %v536, %v534
    %v759 = vpack.c.b16 %v539, %v537
    %v760 = vpack.c.b16 %v540, %v538
    %v761 = vpack.c.b16 %v543, %v541
    %v762 = vpack.c.b16 %v544, %v542
    %v763 = vpack.c.b16 %v547, %v545
    %v764 = vpack.c.b16 %v548, %v546
    %v765 = vpack.c.b16 %v551, %v549
    %v766 = vpack.c.b16 %v552, %v550
    %v767 = vpack.c.b16 %v555, %v553
    %v768 = vpack.c.b16 %v556, %v554
    %v769 = vpack.c.b16 %v559, %v557
    %v770 = vpack.c.b16 %v560, %v558
    %v771 = vpack.c.b16 %v563, %v561
    %v772 = vpack.c.b16 %v564, %v562
    %v773 = vpack.c.b16 %v567, %v565
    %v774 = vpack.c.b16 %v568, %v566
    %v775 = vpack.c.b16 %v571, %v569
    %v776 = vpack.c.b16 %v572, %v570
    %v777 = vpack.c.b16 %v575, %v573
    %v778 = vpack.c.b16 %v576, %v574
    %v779 = vpack.c.b16 %v579, %v577
    %v780 = vpack.c.b16 %v580, %v578
    %v781 = vpack.c.b16 %v583, %v581
    %v782 = vpack.c.b16 %v584, %v582
    %v783 = vpack.c.b16 %v587, %v585
    %v784 = vpack.c.b16 %v588, %v586
    %v785 = vpack.c.b16 %v591, %v589
    %v786 = vpack.c.b16 %v592, %v590
    %v787 = vpack.c.b16 %v595, %v593
    %v788 = vpack.c.b16 %v596, %v594
    %v789 = vpack.c.b16 %v599, %v597
    %v790 = vpack.c.b16 %v600, %v598
    %v791 = vpack.c.b16 %v603, %v601
    %v792 = vpack.c.b16 %v604, %v602
    %v793 = vpack.c.b16 %v607, %v605
    %v794 = vpack.c.b16 %v608, %v606
    %v795 = vpack.c.b16 %v611, %v609
    %v796 = vpack.c.b16 %v612, %v610
    %v797 = vpack.c.b16 %v615, %v613
    %v798 = vpack.c.b16 %v616, %v614
    %v799 = vpack.c.b16 %v619, %v617
    %v800 = vpack.c.b16 %v620, %v618
    %v801 = vpack.c.b16 %v623, %v621
    %v802 = vpack.c.b16 %v624, %v622
    %v803 = vpack.c.b16 %v627, %v625
    %v804 = vpack.c.b16 %v628, %v626
    %v805 = vpack.c.b16 %v631, %v629
    %v806 = vpack.c.b16 %v632, %v630
    %v807 = vpack.c.b16 %v635, %v633
    %v808 = vpack.c.b16 %v636, %v634
    %v809 = vpack.c.b16 %v639, %v637
    %v810 = vpack.c.b16 %v640, %v638
    %v811 = vpack.c.b16 %v643, %v641
    %v812 = vpack.c.b16 %v644, %v642
    %v813 = vpack.c.b16 %v647, %v645
    %v814 = vpack.c.b16 %v648, %v646
    %v815 = vpack.c.b16 %v651, %v649
    %v816 = vpack.c.b16 %v652, %v650
    %v817 = vpack.c.b16 %v655, %v653
    %v818 = vpack.c.b16 %v656, %v654
    %v819 = vpack.c.b16 %v659, %v657
    %v820 = vpack.c.b16 %v660, %v658
    %v821 = vpack.c.b16 %v663, %v661
    %v822 = vpack.c.b16 %v664, %v662
    %v823 = vpack.c.b16 %v667, %v665
    %v824 = vpack.c.b16 %v668, %v666
    %v825 = vpack.c.b16 %v671, %v669
    %v826 = vpack.c.b16 %v672, %v670
    %v827 = vpack.c.b16 %v675, %v673
    %v828 = vpack.c.b16 %v676, %v674
    %v829 = vpack.c.b16 %v679, %v677
    %v830 = vpack.c.b16 %v680, %v678
    %v831 = vpack.c.b16 %v683, %v681
    %v832 = vpack.c.b16 %v684, %v682
    %v833 = vpack.c.b16 %v687, %v685
    %v834 = vpack.c.b16 %v688, %v686
    %v835 = vpack.c.b16 %v691, %v689
    %v836 = vpack.c.b16 %v692, %v690
    %v837 = vpack.c.b16 %v695, %v693
    %v838 = vpack.c.b16 %v696, %v694
    %v839 = vpack.c.b16 %v699, %v697
    %v840 = vpack.c.b16 %v700, %v698
    %v841 = vpack.c.b16 %v703, %v701
    %v842 = vpack.c.b16 %v704, %v702
    %v843 = vpack.c.b16 %v707, %v705
    %v844 = vpack.c.b16 %v708, %v706
    %v845 = vpack.c.b16 %v711, %v709
    %v846 = vpack.c.b16 %v712, %v710
    %v847 = vpack.c.b16 %v715, %v713
    %v848 = vpack.c.b16 %v716, %v714
    %v849 = vpack.c.b16 %v719, %v717
    %v850 = vpack.c.b16 %v720, %v718
    %v851 = vpack.c.b16 %v723, %v721
    %v852 = vpack.c.b16 %v724, %v722
    %981 = vmatpush.bf16.msra.mxu0 %v739
    %982 = vmatpush.bf16.msra.mxu0 %v737
    %983 = vmatpush.bf16.msra.mxu0 %v735
    %984 = vmatpush.bf16.msra.mxu0 %v733
    %985 = vmatpush.bf16.msra.mxu0 %v731
    %986 = vmatpush.bf16.msra.mxu0 %v729
    %987 = vmatpush.bf16.msra.mxu0 %v727
    %988 = vmatpush.bf16.msra.mxu0 %v725
    %989 = vmatmul.bf16.gmra.mxu0 %v325
    %v990 = vpop.f32.mrf.mxu0
    %v991 = vadd.f32 %v309, %v990
    %v992 = vpop.f32.mrf.mxu0
    %993 = vdwg.mxu0
    %994 = vmatpush.bf16.msra.mxu0 %v755
    %995 = vmatpush.bf16.msra.mxu0 %v753
    %996 = vmatpush.bf16.msra.mxu0 %v751
    %997 = vmatpush.bf16.msra.mxu0 %v749
    %998 = vmatpush.bf16.msra.mxu0 %v747
    %999 = vmatpush.bf16.msra.mxu0 %v745
    %1000 = vmatpush.bf16.msra.mxu0 %v743
    %1001 = vmatpush.bf16.msra.mxu0 %v741
    %1002 = vmatmul.bf16.gmra.mxu0 %v326
    %v1003 = vpop.f32.mrf.mxu0
    %v1004 = vadd.f32 %v991, %v1003
    %v1005 = vpop.f32.mrf.mxu0
    %1006 = vdwg.mxu0
    %1007 = vmatpush.bf16.msra.mxu0 %v771
    %1008 = vmatpush.bf16.msra.mxu0 %v769
    %1009 = vmatpush.bf16.msra.mxu0 %v767
    %1010 = vmatpush.bf16.msra.mxu0 %v765
    %1011 = vmatpush.bf16.msra.mxu0 %v763
    %1012 = vmatpush.bf16.msra.mxu0 %v761
    %1013 = vmatpush.bf16.msra.mxu0 %v759
    %1014 = vmatpush.bf16.msra.mxu0 %v757
    %1015 = vmatmul.bf16.gmra.mxu0 %v327
    %v1016 = vpop.f32.mrf.mxu0
    %v1017 = vadd.f32 %v1004, %v1016
    %v1018 = vpop.f32.mrf.mxu0
    %1019 = vdwg.mxu0
    %1020 = vmatpush.bf16.msra.mxu0 %v787
    %1021 = vmatpush.bf16.msra.mxu0 %v785
    %1022 = vmatpush.bf16.msra.mxu0 %v783
    %1023 = vmatpush.bf16.msra.mxu0 %v781
    %1024 = vmatpush.bf16.msra.mxu0 %v779
    %1025 = vmatpush.bf16.msra.mxu0 %v777
    %1026 = vmatpush.bf16.msra.mxu0 %v775
    %1027 = vmatpush.bf16.msra.mxu0 %v773
    %1028 = vmatmul.bf16.gmra.mxu0 %v328
    %v1029 = vpop.f32.mrf.mxu0
    %v1030 = vadd.f32 %v1017, %v1029
    %v1031 = vpop.f32.mrf.mxu0
    %1032 = vdwg.mxu0
    %1033 = vmatpush.bf16.msra.mxu0 %v803
    %1034 = vmatpush.bf16.msra.mxu0 %v801
    %1035 = vmatpush.bf16.msra.mxu0 %v799
    %1036 = vmatpush.bf16.msra.mxu0 %v797
    %1037 = vmatpush.bf16.msra.mxu0 %v795
    %1038 = vmatpush.bf16.msra.mxu0 %v793
    %1039 = vmatpush.bf16.msra.mxu0 %v791
    %1040 = vmatpush.bf16.msra.mxu0 %v789
    %1041 = vmatmul.bf16.gmra.mxu0 %v329
    %v1042 = vpop.f32.mrf.mxu0
    %v1043 = vadd.f32 %v1030, %v1042
    %v1044 = vpop.f32.mrf.mxu0
    %1045 = vdwg.mxu0
    %1046 = vmatpush.bf16.msra.mxu0 %v819
    %1047 = vmatpush.bf16.msra.mxu0 %v817
    %1048 = vmatpush.bf16.msra.mxu0 %v815
    %1049 = vmatpush.bf16.msra.mxu0 %v813
    %1050 = vmatpush.bf16.msra.mxu0 %v811
    %1051 = vmatpush.bf16.msra.mxu0 %v809
    %1052 = vmatpush.bf16.msra.mxu0 %v807
    %1053 = vmatpush.bf16.msra.mxu0 %v805
    %1054 = vmatmul.bf16.gmra.mxu0 %v330
    %v1055 = vpop.f32.mrf.mxu0
    %v1056 = vadd.f32 %v1043, %v1055
    %v1057 = vpop.f32.mrf.mxu0
    %1058 = vdwg.mxu0
    %1059 = vmatpush.bf16.msra.mxu0 %v835
    %1060 = vmatpush.bf16.msra.mxu0 %v833
    %1061 = vmatpush.bf16.msra.mxu0 %v831
    %1062 = vmatpush.bf16.msra.mxu0 %v829
    %1063 = vmatpush.bf16.msra.mxu0 %v827
    %1064 = vmatpush.bf16.msra.mxu0 %v825
    %1065 = vmatpush.bf16.msra.mxu0 %v823
    %1066 = vmatpush.bf16.msra.mxu0 %v821
    %1067 = vmatmul.bf16.gmra.mxu0 %v331
    %v1068 = vpop.f32.mrf.mxu0
    %v1069 = vadd.f32 %v1056, %v1068
    %v1070 = vpop.f32.mrf.mxu0
    %1071 = vdwg.mxu0
    %1072 = vmatpush.bf16.msra.mxu0 %v851
    %1073 = vmatpush.bf16.msra.mxu0 %v849
    %1074 = vmatpush.bf16.msra.mxu0 %v847
    %1075 = vmatpush.bf16.msra.mxu0 %v845
    %1076 = vmatpush.bf16.msra.mxu0 %v843
    %1077 = vmatpush.bf16.msra.mxu0 %v841
    %1078 = vmatpush.bf16.msra.mxu0 %v839
    %1079 = vmatpush.bf16.msra.mxu0 %v837
    %1080 = vmatmul.bf16.gmra.mxu0 %v332
    %v1081 = vpop.f32.mrf.mxu0
    %v1082 = vadd.f32 %v1069, %v1081
    %v1083 = vpop.f32.mrf.mxu0
    %1084 = vdwg.mxu0
    %1085 = vmatpush.bf16.msra.mxu0 %v740
    %1086 = vmatpush.bf16.msra.mxu0 %v738
    %1087 = vmatpush.bf16.msra.mxu0 %v736
    %1088 = vmatpush.bf16.msra.mxu0 %v734
    %1089 = vmatpush.bf16.msra.mxu0 %v732
    %1090 = vmatpush.bf16.msra.mxu0 %v730
    %1091 = vmatpush.bf16.msra.mxu0 %v728
    %1092 = vmatpush.bf16.msra.mxu0 %v726
    %1093 = vmatmul.bf16.gmra.mxu0 %v325
    %v1094 = vpop.f32.mrf.mxu0
    %v1095 = vadd.f32 %v310, %v1094
    %v1096 = vpop.f32.mrf.mxu0
    %1097 = vdwg.mxu0
    %1098 = vmatpush.bf16.msra.mxu0 %v756
    %1099 = vmatpush.bf16.msra.mxu0 %v754
    %1100 = vmatpush.bf16.msra.mxu0 %v752
    %1101 = vmatpush.bf16.msra.mxu0 %v750
    %1102 = vmatpush.bf16.msra.mxu0 %v748
    %1103 = vmatpush.bf16.msra.mxu0 %v746
    %1104 = vmatpush.bf16.msra.mxu0 %v744
    %1105 = vmatpush.bf16.msra.mxu0 %v742
    %1106 = vmatmul.bf16.gmra.mxu0 %v326
    %v1107 = vpop.f32.mrf.mxu0
    %v1108 = vadd.f32 %v1095, %v1107
    %v1109 = vpop.f32.mrf.mxu0
    %1110 = vdwg.mxu0
    %1111 = vmatpush.bf16.msra.mxu0 %v772
    %1112 = vmatpush.bf16.msra.mxu0 %v770
    %1113 = vmatpush.bf16.msra.mxu0 %v768
    %1114 = vmatpush.bf16.msra.mxu0 %v766
    %1115 = vmatpush.bf16.msra.mxu0 %v764
    %1116 = vmatpush.bf16.msra.mxu0 %v762
    %1117 = vmatpush.bf16.msra.mxu0 %v760
    %1118 = vmatpush.bf16.msra.mxu0 %v758
    %1119 = vmatmul.bf16.gmra.mxu0 %v327
    %v1120 = vpop.f32.mrf.mxu0
    %v1121 = vadd.f32 %v1108, %v1120
    %v1122 = vpop.f32.mrf.mxu0
    %1123 = vdwg.mxu0
    %1124 = vmatpush.bf16.msra.mxu0 %v788
    %1125 = vmatpush.bf16.msra.mxu0 %v786
    %1126 = vmatpush.bf16.msra.mxu0 %v784
    %1127 = vmatpush.bf16.msra.mxu0 %v782
    %1128 = vmatpush.bf16.msra.mxu0 %v780
    %1129 = vmatpush.bf16.msra.mxu0 %v778
    %1130 = vmatpush.bf16.msra.mxu0 %v776
    %1131 = vmatpush.bf16.msra.mxu0 %v774
    %1132 = vmatmul.bf16.gmra.mxu0 %v328
    %v1133 = vpop.f32.mrf.mxu0
    %v1134 = vadd.f32 %v1121, %v1133
    %v1135 = vpop.f32.mrf.mxu0
    %1136 = vdwg.mxu0
    %1137 = vmatpush.bf16.msra.mxu0 %v804
    %1138 = vmatpush.bf16.msra.mxu0 %v802
    %1139 = vmatpush.bf16.msra.mxu0 %v800
    %1140 = vmatpush.bf16.msra.mxu0 %v798
    %1141 = vmatpush.bf16.msra.mxu0 %v796
    %1142 = vmatpush.bf16.msra.mxu0 %v794
    %1143 = vmatpush.bf16.msra.mxu0 %v792
    %1144 = vmatpush.bf16.msra.mxu0 %v790
    %1145 = vmatmul.bf16.gmra.mxu0 %v329
    %v1146 = vpop.f32.mrf.mxu0
    %v1147 = vadd.f32 %v1134, %v1146
    %v1148 = vpop.f32.mrf.mxu0
    %1149 = vdwg.mxu0
    %1150 = vmatpush.bf16.msra.mxu0 %v820
    %1151 = vmatpush.bf16.msra.mxu0 %v818
    %1152 = vmatpush.bf16.msra.mxu0 %v816
    %1153 = vmatpush.bf16.msra.mxu0 %v814
    %1154 = vmatpush.bf16.msra.mxu0 %v812
    %1155 = vmatpush.bf16.msra.mxu0 %v810
    %1156 = vmatpush.bf16.msra.mxu0 %v808
    %1157 = vmatpush.bf16.msra.mxu0 %v806
    %1158 = vmatmul.bf16.gmra.mxu0 %v330
    %v1159 = vpop.f32.mrf.mxu0
    %v1160 = vadd.f32 %v1147, %v1159
    %v1161 = vpop.f32.mrf.mxu0
    %1162 = vdwg.mxu0
    %1163 = vmatpush.bf16.msra.mxu0 %v836
    %1164 = vmatpush.bf16.msra.mxu0 %v834
    %1165 = vmatpush.bf16.msra.mxu0 %v832
    %1166 = vmatpush.bf16.msra.mxu0 %v830
    %1167 = vmatpush.bf16.msra.mxu0 %v828
    %1168 = vmatpush.bf16.msra.mxu0 %v826
    %1169 = vmatpush.bf16.msra.mxu0 %v824
    %1170 = vmatpush.bf16.msra.mxu0 %v822
    %1171 = vmatmul.bf16.gmra.mxu0 %v331
    %v1172 = vpop.f32.mrf.mxu0
    %v1173 = vadd.f32 %v1160, %v1172
    %v1174 = vpop.f32.mrf.mxu0
    %1175 = vdwg.mxu0
    %1176 = vmatpush.bf16.msra.mxu0 %v852
    %1177 = vmatpush.bf16.msra.mxu0 %v850
    %1178 = vmatpush.bf16.msra.mxu0 %v848
    %1179 = vmatpush.bf16.msra.mxu0 %v846
    %1180 = vmatpush.bf16.msra.mxu0 %v844
    %1181 = vmatpush.bf16.msra.mxu0 %v842
    %1182 = vmatpush.bf16.msra.mxu0 %v840
    %1183 = vmatpush.bf16.msra.mxu0 %v838
    %1184 = vmatmul.bf16.gmra.mxu0 %v332
    %v1185 = vpop.f32.mrf.mxu0
    %v1186 = vadd.f32 %v1173, %v1185
    %v1187 = vpop.f32.mrf.mxu0
    %1188 = vdwg.mxu0
    %v1189 = vmax.f32 %v1082, 0.0
    %v1190 = vmax.f32 %v1186, 0.0
    %v1191 = vpack.c.bf16 %v1189, %v1189
    %v1192 = vpack.c.bf16 %v1190, %v1190
    %v1193 = vld [vmem:[%s2] sm:$0xf]
    %v1194 = vld [vmem:[%s2 + $0x4] sm:$0xf]
    %v1195 = vld [vmem:[%s2 + $0x8] sm:$0xf]
    %v1196 = vld [vmem:[%s2 + $0xc] sm:$0xf]
    %v1197 = vld [vmem:[%s2 + $0x10] sm:$0xf]
    %v1198 = vld [vmem:[%s2 + $0x14] sm:$0xf]
    %v1199 = vld [vmem:[%s2 + $0x18] sm:$0xf]
    %v1200 = vld [vmem:[%s2 + $0x1c] sm:$0xf]
    %v1201 = vld [vmem:[%s2 + $0x20] sm:$0xf]
    %v1202 = vld [vmem:[%s2 + $0x24] sm:$0xf]
    %v1203 = vld [vmem:[%s2 + $0x28] sm:$0xf]
    %v1204 = vld [vmem:[%s2 + $0x2c] sm:$0xf]
    %v1205 = vld [vmem:[%s2 + $0x30] sm:$0xf]
    %v1206 = vld [vmem:[%s2 + $0x34] sm:$0xf]
    %v1207 = vld [vmem:[%s2 + $0x38] sm:$0xf]
    %v1208 = vld [vmem:[%s2 + $0x3c] sm:$0xf]
    %v1209 = vld [vmem:[%s2 + $0x40] sm:$0xf]
    %v1210 = vld [vmem:[%s2 + $0x44] sm:$0xf]
    %v1211 = vld [vmem:[%s2 + $0x48] sm:$0xf]
    %v1212 = vld [vmem:[%s2 + $0x4c] sm:$0xf]
    %v1213 = vld [vmem:[%s2 + $0x50] sm:$0xf]
    %v1214 = vld [vmem:[%s2 + $0x54] sm:$0xf]
    %v1215 = vld [vmem:[%s2 + $0x58] sm:$0xf]
    %v1216 = vld [vmem:[%s2 + $0x5c] sm:$0xf]
    %v1217 = vld [vmem:[%s2 + $0x60] sm:$0xf]
    %v1218 = vld [vmem:[%s2 + $0x64] sm:$0xf]
    %v1219 = vld [vmem:[%s2 + $0x68] sm:$0xf]
    %v1220 = vld [vmem:[%s2 + $0x6c] sm:$0xf]
    %v1221 = vld [vmem:[%s2 + $0x70] sm:$0xf]
    %v1222 = vld [vmem:[%s2 + $0x74] sm:$0xf]
    %v1223 = vld [vmem:[%s2 + $0x78] sm:$0xf]
    %v1224 = vld [vmem:[%s2 + $0x7c] sm:$0xf]
    %v1225 = vld [vmem:[%s12] sm:$0x1]
    %v1227 = vperm.slane %v1225, 0
    %v1261 = vunpack.c.l.b16 %v1193
    %v1262 = vunpack.c.l.b16 %v1194
    %v1263 = vunpack.c.l.b16 %v1195
    %v1264 = vunpack.c.l.b16 %v1196
    %v1265 = vunpack.c.l.b16 %v1197
    %v1266 = vunpack.c.l.b16 %v1198
    %v1267 = vunpack.c.l.b16 %v1199
    %v1268 = vunpack.c.l.b16 %v1200
    %v1269 = vunpack.c.l.b16 %v1201
    %v1270 = vunpack.c.l.b16 %v1202
    %v1271 = vunpack.c.l.b16 %v1203
    %v1272 = vunpack.c.l.b16 %v1204
    %v1273 = vunpack.c.l.b16 %v1205
    %v1274 = vunpack.c.l.b16 %v1206
    %v1275 = vunpack.c.l.b16 %v1207
    %v1276 = vunpack.c.l.b16 %v1208
    %v1277 = vunpack.c.l.b16 %v1209
    %v1278 = vunpack.c.l.b16 %v1210
    %v1279 = vunpack.c.l.b16 %v1211
    %v1280 = vunpack.c.l.b16 %v1212
    %v1281 = vunpack.c.l.b16 %v1213
    %v1282 = vunpack.c.l.b16 %v1214
    %v1283 = vunpack.c.l.b16 %v1215
    %v1284 = vunpack.c.l.b16 %v1216
    %v1285 = vunpack.c.l.b16 %v1217
    %v1286 = vunpack.c.l.b16 %v1218
    %v1287 = vunpack.c.l.b16 %v1219
    %v1288 = vunpack.c.l.b16 %v1220
    %v1289 = vunpack.c.l.b16 %v1221
    %v1290 = vunpack.c.l.b16 %v1222
    %v1291 = vunpack.c.l.b16 %v1223
    %v1292 = vunpack.c.l.b16 %v1224
    %v1293 = vpack.c.b16 %v1262, %v1261
    %v1294 = vpack.c.b16 %v1264, %v1263
    %v1295 = vpack.c.b16 %v1266, %v1265
    %v1296 = vpack.c.b16 %v1268, %v1267
    %v1297 = vpack.c.b16 %v1270, %v1269
    %v1298 = vpack.c.b16 %v1272, %v1271
    %v1299 = vpack.c.b16 %v1274, %v1273
    %v1300 = vpack.c.b16 %v1276, %v1275
    %v1301 = vpack.c.b16 %v1278, %v1277
    %v1302 = vpack.c.b16 %v1280, %v1279
    %v1303 = vpack.c.b16 %v1282, %v1281
    %v1304 = vpack.c.b16 %v1284, %v1283
    %v1305 = vpack.c.b16 %v1286, %v1285
    %v1306 = vpack.c.b16 %v1288, %v1287
    %v1307 = vpack.c.b16 %v1290, %v1289
    %v1308 = vpack.c.b16 %v1292, %v1291
    %1325 = vmatpush.bf16.msra.mxu0 %v1300
    %1326 = vmatpush.bf16.msra.mxu0 %v1299
    %1327 = vmatpush.bf16.msra.mxu0 %v1298
    %1328 = vmatpush.bf16.msra.mxu0 %v1297
    %1329 = vmatpush.bf16.msra.mxu0 %v1296
    %1330 = vmatpush.bf16.msra.mxu0 %v1295
    %1331 = vmatpush.bf16.msra.mxu0 %v1294
    %1332 = vmatpush.bf16.msra.mxu0 %v1293
    %1333 = vmatmul.bf16.gmra.mxu0 %v1191
    %v1334 = vpop.f32.mrf.mxu0
    %v1335 = vadd.f32 %v1227, %v1334
    %v1336 = vpop.f32.mrf.mxu0
    %1337 = vdwg.mxu0
    %1338 = vmatpush.bf16.msra.mxu0 %v1308
    %1339 = vmatpush.bf16.msra.mxu0 %v1307
    %1340 = vmatpush.bf16.msra.mxu0 %v1306
    %1341 = vmatpush.bf16.msra.mxu0 %v1305
    %1342 = vmatpush.bf16.msra.mxu0 %v1304
    %1343 = vmatpush.bf16.msra.mxu0 %v1303
    %1344 = vmatpush.bf16.msra.mxu0 %v1302
    %1345 = vmatpush.bf16.msra.mxu0 %v1301
    %1346 = vmatmul.bf16.gmra.mxu0 %v1192
    %v1347 = vpop.f32.mrf.mxu0
    %v1348 = vadd.f32 %v1335, %v1347
    %v1349 = vpop.f32.mrf.mxu0
    %1350 = vdwg.mxu0
    %v1351 = vmax.f32 %v1348, 0.0
    %v1352 = vpack.c.bf16 %v1351, %v1351
    %v1353 = vld [vmem:[%s3] sm:$0xf]
    %v1354 = vld [vmem:[%s3 + $0x4] sm:$0xf]
    %v1355 = vld [vmem:[%s3 + $0x8] sm:$0xf]
    %v1356 = vld [vmem:[%s3 + $0xc] sm:$0xf]
    %v1357 = vld [vmem:[%s3 + $0x10] sm:$0xf]
    %v1358 = vld [vmem:[%s3 + $0x14] sm:$0xf]
    %v1359 = vld [vmem:[%s3 + $0x18] sm:$0xf]
    %v1360 = vld [vmem:[%s3 + $0x1c] sm:$0xf]
    %v1361 = vld [vmem:[%s3 + $0x20] sm:$0xf]
    %v1362 = vld [vmem:[%s3 + $0x24] sm:$0xf]
    %v1363 = vld [vmem:[%s3 + $0x28] sm:$0xf]
    %v1364 = vld [vmem:[%s3 + $0x2c] sm:$0xf]
    %v1365 = vld [vmem:[%s3 + $0x30] sm:$0xf]
    %v1366 = vld [vmem:[%s3 + $0x34] sm:$0xf]
    %v1367 = vld [vmem:[%s3 + $0x38] sm:$0xf]
    %v1368 = vld [vmem:[%s3 + $0x3c] sm:$0xf]
    %v1369 = vld [vmem:[#allocation13] sm:$0x1]
    %v1371 = vperm.slane %v1369, 0
    %v1389 = vunpack.c.l.b16 %v1353
    %v1390 = vunpack.c.l.b16 %v1354
    %v1391 = vunpack.c.l.b16 %v1355
    %v1392 = vunpack.c.l.b16 %v1356
    %v1393 = vunpack.c.l.b16 %v1357
    %v1394 = vunpack.c.l.b16 %v1358
    %v1395 = vunpack.c.l.b16 %v1359
    %v1396 = vunpack.c.l.b16 %v1360
    %v1397 = vunpack.c.l.b16 %v1361
    %v1398 = vunpack.c.l.b16 %v1362
    %v1399 = vunpack.c.l.b16 %v1363
    %v1400 = vunpack.c.l.b16 %v1364
    %v1401 = vunpack.c.l.b16 %v1365
    %v1402 = vunpack.c.l.b16 %v1366
    %v1403 = vunpack.c.l.b16 %v1367
    %v1404 = vunpack.c.l.b16 %v1368
    %v1405 = vpack.c.b16 %v1390, %v1389
    %v1406 = vpack.c.b16 %v1392, %v1391
    %v1407 = vpack.c.b16 %v1394, %v1393
    %v1408 = vpack.c.b16 %v1396, %v1395
    %v1409 = vpack.c.b16 %v1398, %v1397
    %v1410 = vpack.c.b16 %v1400, %v1399
    %v1411 = vpack.c.b16 %v1402, %v1401
    %v1412 = vpack.c.b16 %v1404, %v1403
    %1421 = vmatpush.bf16.msra.mxu0 %v1412
    %1422 = vmatpush.bf16.msra.mxu0 %v1411
    %1423 = vmatpush.bf16.msra.mxu0 %v1410
    %1424 = vmatpush.bf16.msra.mxu0 %v1409
    %1425 = vmatpush.bf16.msra.mxu0 %v1408
    %1426 = vmatpush.bf16.msra.mxu0 %v1407
    %1427 = vmatpush.bf16.msra.mxu0 %v1406
    %1428 = vmatpush.bf16.msra.mxu0 %v1405
    %1429 = vmatmul.bf16.gmra.mxu0 %v1352
    %v1430 = vpop.f32.mrf.mxu0
    %v1431 = vadd.f32 %v1371, %v1430
    %v1432 = vpop.f32.mrf.mxu0
    %1433 = vdwg.mxu0
    %v1434 = vmax.f32 %v1431, 0.0
    %v1435 = vpack.c.bf16 %v1434, %v1434
    %v1436 = vld [vmem:[%s4] sm:$0xf]
    %v1437 = vld [vmem:[%s4 + $0x4] sm:$0xf]
    %v1438 = vld [vmem:[%s4 + $0x8] sm:$0xf]
    %v1439 = vld [vmem:[%s4 + $0xc] sm:$0xf]
    %v1440 = vld [vmem:[%s4 + $0x10] sm:$0xf]
    %v1441 = vld [vmem:[%s4 + $0x14] sm:$0xf]
    %v1442 = vld [vmem:[%s4 + $0x18] sm:$0xf]
    %v1443 = vld [vmem:[%s4 + $0x1c] sm:$0xf]
    %v1444 = vld [vmem:[%s14] sm:$0x1]
    %v1446 = vperm.slane %v1444, 0
    %v1456 = vunpack.c.l.b16 %v1436
    %v1457 = vunpack.c.l.b16 %v1437
    %v1458 = vunpack.c.l.b16 %v1438
    %v1459 = vunpack.c.l.b16 %v1439
    %v1460 = vunpack.c.l.b16 %v1440
    %v1461 = vunpack.c.l.b16 %v1441
    %v1462 = vunpack.c.l.b16 %v1442
    %v1463 = vunpack.c.l.b16 %v1443
    %v1464 = vpack.c.b16 %v1457, %v1456
    %v1465 = vpack.c.b16 %v1459, %v1458
    %v1466 = vpack.c.b16 %v1461, %v1460
    %v1467 = vpack.c.b16 %v1463, %v1462
    %vm1472 = vcmask 523264
    %v1474 = vsel %vm1472, %v1435, 0
    %1476 = vmatpush.bf16.msra.mxu0 0
    %1477 = vmatpush.bf16.msra.mxu0 0
    %1478 = vmatpush.bf16.msra.mxu0 0
    %1479 = vmatpush.bf16.msra.mxu0 0
    %1480 = vmatpush.bf16.msra.mxu0 %v1467
    %1481 = vmatpush.bf16.msra.mxu0 %v1466
    %1482 = vmatpush.bf16.msra.mxu0 %v1465
    %1483 = vmatpush.bf16.msra.mxu0 %v1464
    %1484 = vmatmul.bf16.gmra.mxu0 %v1474
    %v1485 = vpop.f32.mrf.mxu0
    %v1486 = vadd.f32 %v1446, %v1485
    %v1487 = vpop.f32.mrf.mxu0
    %1488 = vdwg.mxu0
    %v1489 = vmax.f32 %v1486, 0.0
    %v1490 = vpack.c.bf16 %v1489, %v1489
    %v1491 = vld [vmem:[%s5] sm:$0xf]
    %v1492 = vld [vmem:[%s5 + $0x4] sm:$0xf]
    %v1493 = vld [vmem:[%s5 + $0x8] sm:$0xf]
    %v1494 = vld [vmem:[%s5 + $0xc] sm:$0xf]
    %v1495 = vld [vmem:[%s15] sm:$0x1]
    %v1497 = vperm.slane %v1495, 0
    %v1503 = vunpack.c.l.b16 %v1491
    %v1504 = vunpack.c.l.b16 %v1492
    %v1505 = vunpack.c.l.b16 %v1493
    %v1506 = vunpack.c.l.b16 %v1494
    %v1507 = vpack.c.b16 %v1504, %v1503
    %v1508 = vpack.c.b16 %v1506, %v1505
    %vm1511 = vcmask 261120
    %v1513 = vsel %vm1511, %v1490, 0
    %1515 = vmatpush.bf16.msra.mxu0 0
    %1516 = vmatpush.bf16.msra.mxu0 0
    %1517 = vmatpush.bf16.msra.mxu0 0
    %1518 = vmatpush.bf16.msra.mxu0 0
    %1519 = vmatpush.bf16.msra.mxu0 0
    %1520 = vmatpush.bf16.msra.mxu0 0
    %1521 = vmatpush.bf16.msra.mxu0 %v1508
    %1522 = vmatpush.bf16.msra.mxu0 %v1507
    %1523 = vmatmul.bf16.gmra.mxu0 %v1513
    %v1524 = vpop.f32.mrf.mxu0
    %v1525 = vadd.f32 %v1497, %v1524
    %v1526 = vpop.f32.mrf.mxu0
    %1527 = vdwg.mxu0
    %v1528 = vmax.f32 %v1525, 0.0
    %v1529 = vpack.c.bf16 %v1528, %v1528
    %v1530 = vld [vmem:[%s6] sm:$0xf]
    %v1531 = vld [vmem:[%s6 + $0x4] sm:$0xf]
    %v1532 = vld [vmem:[%s16] sm:$0x1]
    %v1534 = vperm.slane %v1532, 0
    %v1538 = vunpack.c.l.b16 %v1530
    %v1539 = vunpack.c.l.b16 %v1531
    %v1540 = vpack.c.b16 %v1539, %v1538
    %vm1542 = vcmask 130048
    %v1544 = vsel %vm1542, %v1529, 0
    %1546 = vmatpush.bf16.msra.mxu0 0
    %1547 = vmatpush.bf16.msra.mxu0 0
    %1548 = vmatpush.bf16.msra.mxu0 0
    %1549 = vmatpush.bf16.msra.mxu0 0
    %1550 = vmatpush.bf16.msra.mxu0 0
    %1551 = vmatpush.bf16.msra.mxu0 0
    %1552 = vmatpush.bf16.msra.mxu0 0
    %1553 = vmatpush.bf16.msra.mxu0 %v1540
    %1554 = vmatmul.bf16.gmra.mxu0 %v1544
    %v1555 = vpop.f32.mrf.mxu0
    %v1556 = vadd.f32 %v1534, %v1555
    %v1557 = vpop.f32.mrf.mxu0
    %1558 = vdwg.mxu0
    %v1559 = vmax.f32 %v1556, 0.0
    %v1560 = vpack.c.bf16 %v1559, %v1559
    %v1561 = vld [vmem:[#allocation5] sm:$0xf]
    %v1562 = vld [vmem:[#allocation5 + $0x4] sm:$0xf]
    %v1563 = vld [vmem:[#allocation5 + $0x8] sm:$0xf]
    %v1564 = vld [vmem:[#allocation5 + $0xc] sm:$0xf]
    %v1565 = vld [vmem:[%s17] sm:$0x1]
    %v1567 = vperm.slane %v1565, 0
    %v1573 = vunpack.c.l.b16 %v1561
    %v1574 = vunpack.c.l.b16 %v1562
    %v1575 = vunpack.c.l.b16 %v1563
    %v1576 = vunpack.c.l.b16 %v1564
    %v1577 = vpack.c.b16 %v1574, %v1573
    %v1578 = vpack.c.b16 %v1576, %v1575
    %v1582 = vsel %vm1511, %v1560, 0
    %1584 = vmatpush.bf16.msra.mxu0 0
    %1585 = vmatpush.bf16.msra.mxu0 0
    %1586 = vmatpush.bf16.msra.mxu0 0
    %1587 = vmatpush.bf16.msra.mxu0 0
    %1588 = vmatpush.bf16.msra.mxu0 0
    %1589 = vmatpush.bf16.msra.mxu0 0
    %1590 = vmatpush.bf16.msra.mxu0 %v1578
    %1591 = vmatpush.bf16.msra.mxu0 %v1577
    %1592 = vmatmul.bf16.gmra.mxu0 %v1582
    %v1593 = vpop.f32.mrf.mxu0
    %v1594 = vadd.f32 %v1567, %v1593
    %v1595 = vpop.f32.mrf.mxu0
    %1596 = vdwg.mxu0
    %v1597 = vmax.f32 %v1594, 0.0
    %v1598 = vpack.c.bf16 %v1597, %v1597
    %v1599 = vld [vmem:[#allocation7] sm:$0xf]
    %v1600 = vld [vmem:[#allocation7 + $0x4] sm:$0xf]
    %v1601 = vld [vmem:[#allocation7 + $0x8] sm:$0xf]
    %v1602 = vld [vmem:[#allocation7 + $0xc] sm:$0xf]
    %v1603 = vld [vmem:[#allocation7 + $0x10] sm:$0xf]
    %v1604 = vld [vmem:[#allocation7 + $0x14] sm:$0xf]
    %v1605 = vld [vmem:[#allocation7 + $0x18] sm:$0xf]
    %v1606 = vld [vmem:[#allocation7 + $0x1c] sm:$0xf]
    %v1607 = vld [vmem:[%s18] sm:$0x1]
    %v1609 = vperm.slane %v1607, 0
    %v1619 = vunpack.c.l.b16 %v1599
    %v1620 = vunpack.c.l.b16 %v1600
    %v1621 = vunpack.c.l.b16 %v1601
    %v1622 = vunpack.c.l.b16 %v1602
    %v1623 = vunpack.c.l.b16 %v1603
    %v1624 = vunpack.c.l.b16 %v1604
    %v1625 = vunpack.c.l.b16 %v1605
    %v1626 = vunpack.c.l.b16 %v1606
    %v1627 = vpack.c.b16 %v1620, %v1619
    %v1628 = vpack.c.b16 %v1622, %v1621
    %v1629 = vpack.c.b16 %v1624, %v1623
    %v1630 = vpack.c.b16 %v1626, %v1625
    %v1636 = vsel %vm1472, %v1598, 0
    %1638 = vmatpush.bf16.msra.mxu0 0
    %1639 = vmatpush.bf16.msra.mxu0 0
    %1640 = vmatpush.bf16.msra.mxu0 0
    %1641 = vmatpush.bf16.msra.mxu0 0
    %1642 = vmatpush.bf16.msra.mxu0 %v1630
    %1643 = vmatpush.bf16.msra.mxu0 %v1629
    %1644 = vmatpush.bf16.msra.mxu0 %v1628
    %1645 = vmatpush.bf16.msra.mxu0 %v1627
    %1646 = vmatmul.bf16.gmra.mxu0 %v1636
    %v1647 = vpop.f32.mrf.mxu0
    %v1648 = vadd.f32 %v1609, %v1647
    %v1649 = vpop.f32.mrf.mxu0
    %1650 = vdwg.mxu0
    %v1651 = vmax.f32 %v1648, 0.0
    %v1652 = vpack.c.bf16 %v1651, %v1651
    %v1653 = vld [vmem:[#allocation8] sm:$0xff]
    %v1654 = vld [vmem:[#allocation8 + $0x8] sm:$0xff]
    %v1655 = vld [vmem:[#allocation8 + $0x10] sm:$0xff]
    %v1656 = vld [vmem:[#allocation8 + $0x18] sm:$0xff]
    %v1657 = vld [vmem:[#allocation8 + $0x20] sm:$0xff]
    %v1658 = vld [vmem:[#allocation8 + $0x28] sm:$0xff]
    %v1659 = vld [vmem:[#allocation8 + $0x30] sm:$0xff]
    %v1660 = vld [vmem:[#allocation8 + $0x38] sm:$0xff]
    %v1661 = vld [vmem:[#allocation8 + $0x40] sm:$0xff]
    %v1662 = vld [vmem:[#allocation8 + $0x48] sm:$0xff]
    %v1663 = vld [vmem:[#allocation8 + $0x50] sm:$0xff]
    %v1664 = vld [vmem:[#allocation8 + $0x58] sm:$0xff]
    %v1665 = vld [vmem:[#allocation8 + $0x60] sm:$0xff]
    %v1666 = vld [vmem:[#allocation8 + $0x68] sm:$0xff]
    %v1667 = vld [vmem:[#allocation8 + $0x70] sm:$0xff]
    %v1668 = vld [vmem:[#allocation8 + $0x78] sm:$0xff]
    %v1669 = vld [vmem:[%s19] sm:$0x3]
    %v1671 = vperm.slane %v1669, 0
    %v1672 = vperm.slane %v1669, 1
    %v1691 = vunpack.c.l.b16 %v1653
    %v1692 = vunpack.c.h.b16 %v1653
    %v1693 = vunpack.c.l.b16 %v1654
    %v1694 = vunpack.c.h.b16 %v1654
    %v1695 = vunpack.c.l.b16 %v1655
    %v1696 = vunpack.c.h.b16 %v1655
    %v1697 = vunpack.c.l.b16 %v1656
    %v1698 = vunpack.c.h.b16 %v1656
    %v1699 = vunpack.c.l.b16 %v1657
    %v1700 = vunpack.c.h.b16 %v1657
    %v1701 = vunpack.c.l.b16 %v1658
    %v1702 = vunpack.c.h.b16 %v1658
    %v1703 = vunpack.c.l.b16 %v1659
    %v1704 = vunpack.c.h.b16 %v1659
    %v1705 = vunpack.c.l.b16 %v1660
    %v1706 = vunpack.c.h.b16 %v1660
    %v1707 = vunpack.c.l.b16 %v1661
    %v1708 = vunpack.c.h.b16 %v1661
    %v1709 = vunpack.c.l.b16 %v1662
    %v1710 = vunpack.c.h.b16 %v1662
    %v1711 = vunpack.c.l.b16 %v1663
    %v1712 = vunpack.c.h.b16 %v1663
    %v1713 = vunpack.c.l.b16 %v1664
    %v1714 = vunpack.c.h.b16 %v1664
    %v1715 = vunpack.c.l.b16 %v1665
    %v1716 = vunpack.c.h.b16 %v1665
    %v1717 = vunpack.c.l.b16 %v1666
    %v1718 = vunpack.c.h.b16 %v1666
    %v1719 = vunpack.c.l.b16 %v1667
    %v1720 = vunpack.c.h.b16 %v1667
    %v1721 = vunpack.c.l.b16 %v1668
    %v1722 = vunpack.c.h.b16 %v1668
    %v1723 = vpack.c.b16 %v1693, %v1691
    %v1724 = vpack.c.b16 %v1694, %v1692
    %v1725 = vpack.c.b16 %v1697, %v1695
    %v1726 = vpack.c.b16 %v1698, %v1696
    %v1727 = vpack.c.b16 %v1701, %v1699
    %v1728 = vpack.c.b16 %v1702, %v1700
    %v1729 = vpack.c.b16 %v1705, %v1703
    %v1730 = vpack.c.b16 %v1706, %v1704
    %v1731 = vpack.c.b16 %v1709, %v1707
    %v1732 = vpack.c.b16 %v1710, %v1708
    %v1733 = vpack.c.b16 %v1713, %v1711
    %v1734 = vpack.c.b16 %v1714, %v1712
    %v1735 = vpack.c.b16 %v1717, %v1715
    %v1736 = vpack.c.b16 %v1718, %v1716
    %v1737 = vpack.c.b16 %v1721, %v1719
    %v1738 = vpack.c.b16 %v1722, %v1720
    %1755 = vmatpush.bf16.msra.mxu0 %v1737
    %1756 = vmatpush.bf16.msra.mxu0 %v1735
    %1757 = vmatpush.bf16.msra.mxu0 %v1733
    %1758 = vmatpush.bf16.msra.mxu0 %v1731
    %1759 = vmatpush.bf16.msra.mxu0 %v1729
    %1760 = vmatpush.bf16.msra.mxu0 %v1727
    %1761 = vmatpush.bf16.msra.mxu0 %v1725
    %1762 = vmatpush.bf16.msra.mxu0 %v1723
    %1763 = vmatmul.bf16.gmra.mxu0 %v1652
    %v1764 = vpop.f32.mrf.mxu0
    %v1765 = vadd.f32 %v1671, %v1764
    %v1766 = vpop.f32.mrf.mxu0
    %1767 = vdwg.mxu0
    %1768 = vmatpush.bf16.msra.mxu0 %v1738
    %1769 = vmatpush.bf16.msra.mxu0 %v1736
    %1770 = vmatpush.bf16.msra.mxu0 %v1734
    %1771 = vmatpush.bf16.msra.mxu0 %v1732
    %1772 = vmatpush.bf16.msra.mxu0 %v1730
    %1773 = vmatpush.bf16.msra.mxu0 %v1728
    %1774 = vmatpush.bf16.msra.mxu0 %v1726
    %1775 = vmatpush.bf16.msra.mxu0 %v1724
    %1776 = vmatmul.bf16.gmra.mxu0 %v1652
    %v1777 = vpop.f32.mrf.mxu0
    %v1778 = vadd.f32 %v1672, %v1777
    %v1779 = vpop.f32.mrf.mxu0
    %1780 = vdwg.mxu0
    %v1781 = vmax.f32 %v1765, 0.0
    %v1782 = vmax.f32 %v1778, 0.0
    %v1783 = vpack.c.bf16 %v1781, %v1781
    %v1784 = vpack.c.bf16 %v1782, %v1782
    %v1785 = vld [vmem:[#allocation10] sm:$0xff]
    %v1786 = vld [vmem:[#allocation10 + $0x8] sm:$0xff]
    %v1787 = vld [vmem:[#allocation10 + $0x10] sm:$0xff]
    %v1788 = vld [vmem:[#allocation10 + $0x18] sm:$0xff]
    %v1789 = vld [vmem:[#allocation10 + $0x20] sm:$0xff]
    %v1790 = vld [vmem:[#allocation10 + $0x28] sm:$0xff]
    %v1791 = vld [vmem:[#allocation10 + $0x30] sm:$0xff]
    %v1792 = vld [vmem:[#allocation10 + $0x38] sm:$0xff]
    %v1793 = vld [vmem:[#allocation10 + $0x40] sm:$0xff]
    %v1794 = vld [vmem:[#allocation10 + $0x48] sm:$0xff]
    %v1795 = vld [vmem:[#allocation10 + $0x50] sm:$0xff]
    %v1796 = vld [vmem:[#allocation10 + $0x58] sm:$0xff]
    %v1797 = vld [vmem:[#allocation10 + $0x60] sm:$0xff]
    %v1798 = vld [vmem:[#allocation10 + $0x68] sm:$0xff]
    %v1799 = vld [vmem:[#allocation10 + $0x70] sm:$0xff]
    %v1800 = vld [vmem:[#allocation10 + $0x78] sm:$0xff]
    %v1801 = vld [vmem:[#allocation10 + $0x80] sm:$0xff]
    %v1802 = vld [vmem:[#allocation10 + $0x88] sm:$0xff]
    %v1803 = vld [vmem:[#allocation10 + $0x90] sm:$0xff]
    %v1804 = vld [vmem:[#allocation10 + $0x98] sm:$0xff]
    %v1805 = vld [vmem:[#allocation10 + $0xa0] sm:$0xff]
    %v1806 = vld [vmem:[#allocation10 + $0xa8] sm:$0xff]
    %v1807 = vld [vmem:[#allocation10 + $0xb0] sm:$0xff]
    %v1808 = vld [vmem:[#allocation10 + $0xb8] sm:$0xff]
    %v1809 = vld [vmem:[#allocation10 + $0xc0] sm:$0xff]
    %v1810 = vld [vmem:[#allocation10 + $0xc8] sm:$0xff]
    %v1811 = vld [vmem:[#allocation10 + $0xd0] sm:$0xff]
    %v1812 = vld [vmem:[#allocation10 + $0xd8] sm:$0xff]
    %v1813 = vld [vmem:[#allocation10 + $0xe0] sm:$0xff]
    %v1814 = vld [vmem:[#allocation10 + $0xe8] sm:$0xff]
    %v1815 = vld [vmem:[#allocation10 + $0xf0] sm:$0xff]
    %v1816 = vld [vmem:[#allocation10 + $0xf8] sm:$0xff]
    %v1817 = vld [vmem:[#allocation10 + $0x100] sm:$0xff]
    %v1818 = vld [vmem:[#allocation10 + $0x108] sm:$0xff]
    %v1819 = vld [vmem:[#allocation10 + $0x110] sm:$0xff]
    %v1820 = vld [vmem:[#allocation10 + $0x118] sm:$0xff]
    %v1821 = vld [vmem:[#allocation10 + $0x120] sm:$0xff]
    %v1822 = vld [vmem:[#allocation10 + $0x128] sm:$0xff]
    %v1823 = vld [vmem:[#allocation10 + $0x130] sm:$0xff]
    %v1824 = vld [vmem:[#allocation10 + $0x138] sm:$0xff]
    %v1825 = vld [vmem:[#allocation10 + $0x140] sm:$0xff]
    %v1826 = vld [vmem:[#allocation10 + $0x148] sm:$0xff]
    %v1827 = vld [vmem:[#allocation10 + $0x150] sm:$0xff]
    %v1828 = vld [vmem:[#allocation10 + $0x158] sm:$0xff]
    %v1829 = vld [vmem:[#allocation10 + $0x160] sm:$0xff]
    %v1830 = vld [vmem:[#allocation10 + $0x168] sm:$0xff]
    %v1831 = vld [vmem:[#allocation10 + $0x170] sm:$0xff]
    %v1832 = vld [vmem:[#allocation10 + $0x178] sm:$0xff]
    %v1833 = vld [vmem:[#allocation10 + $0x180] sm:$0xff]
    %v1834 = vld [vmem:[#allocation10 + $0x188] sm:$0xff]
    %v1835 = vld [vmem:[#allocation10 + $0x190] sm:$0xff]
    %v1836 = vld [vmem:[#allocation10 + $0x198] sm:$0xff]
    %v1837 = vld [vmem:[#allocation10 + $0x1a0] sm:$0xff]
    %v1838 = vld [vmem:[#allocation10 + $0x1a8] sm:$0xff]
    %v1839 = vld [vmem:[#allocation10 + $0x1b0] sm:$0xff]
    %v1840 = vld [vmem:[#allocation10 + $0x1b8] sm:$0xff]
    %v1841 = vld [vmem:[#allocation10 + $0x1c0] sm:$0xff]
    %v1842 = vld [vmem:[#allocation10 + $0x1c8] sm:$0xff]
    %v1843 = vld [vmem:[#allocation10 + $0x1d0] sm:$0xff]
    %v1844 = vld [vmem:[#allocation10 + $0x1d8] sm:$0xff]
    %v1845 = vld [vmem:[#allocation10 + $0x1e0] sm:$0xff]
    %v1846 = vld [vmem:[#allocation10 + $0x1e8] sm:$0xff]
    %v1847 = vld [vmem:[#allocation10 + $0x1f0] sm:$0xff]
    %v1848 = vld [vmem:[#allocation10 + $0x1f8] sm:$0xff]
    %v1849 = vld [vmem:[#allocation10 + $0x200] sm:$0xff]
    %v1850 = vld [vmem:[#allocation10 + $0x208] sm:$0xff]
    %v1851 = vld [vmem:[#allocation10 + $0x210] sm:$0xff]
    %v1852 = vld [vmem:[#allocation10 + $0x218] sm:$0xff]
    %v1853 = vld [vmem:[#allocation10 + $0x220] sm:$0xff]
    %v1854 = vld [vmem:[#allocation10 + $0x228] sm:$0xff]
    %v1855 = vld [vmem:[#allocation10 + $0x230] sm:$0xff]
    %v1856 = vld [vmem:[#allocation10 + $0x238] sm:$0xff]
    %v1857 = vld [vmem:[#allocation10 + $0x240] sm:$0xff]
    %v1858 = vld [vmem:[#allocation10 + $0x248] sm:$0xff]
    %v1859 = vld [vmem:[#allocation10 + $0x250] sm:$0xff]
    %v1860 = vld [vmem:[#allocation10 + $0x258] sm:$0xff]
    %v1861 = vld [vmem:[#allocation10 + $0x260] sm:$0xff]
    %v1862 = vld [vmem:[#allocation10 + $0x268] sm:$0xff]
    %v1863 = vld [vmem:[#allocation10 + $0x270] sm:$0xff]
    %v1864 = vld [vmem:[#allocation10 + $0x278] sm:$0xff]
    %v1865 = vld [vmem:[#allocation10 + $0x280] sm:$0xff]
    %v1866 = vld [vmem:[#allocation10 + $0x288] sm:$0xff]
    %v1867 = vld [vmem:[#allocation10 + $0x290] sm:$0xff]
    %v1868 = vld [vmem:[#allocation10 + $0x298] sm:$0xff]
    %v1869 = vld [vmem:[#allocation10 + $0x2a0] sm:$0xff]
    %v1870 = vld [vmem:[#allocation10 + $0x2a8] sm:$0xff]
    %v1871 = vld [vmem:[#allocation10 + $0x2b0] sm:$0xff]
    %v1872 = vld [vmem:[#allocation10 + $0x2b8] sm:$0xff]
    %v1873 = vld [vmem:[#allocation10 + $0x2c0] sm:$0xff]
    %v1874 = vld [vmem:[#allocation10 + $0x2c8] sm:$0xff]
    %v1875 = vld [vmem:[#allocation10 + $0x2d0] sm:$0xff]
    %v1876 = vld [vmem:[#allocation10 + $0x2d8] sm:$0xff]
    %v1877 = vld [vmem:[#allocation10 + $0x2e0] sm:$0xff]
    %v1878 = vld [vmem:[#allocation10 + $0x2e8] sm:$0xff]
    %v1879 = vld [vmem:[#allocation10 + $0x2f0] sm:$0xff]
    %v1880 = vld [vmem:[#allocation10 + $0x2f8] sm:$0xff]
    %v1881 = vld [vmem:[#allocation10 + $0x300] sm:$0xff]
    %v1882 = vld [vmem:[#allocation10 + $0x308] sm:$0xff]
    %v1883 = vld [vmem:[#allocation10 + $0x310] sm:$0xff]
    %v1884 = vld [vmem:[#allocation10 + $0x318] sm:$0xff]
    %v1885 = vld [vmem:[#allocation10 + $0x320] sm:$0xff]
    %v1886 = vld [vmem:[#allocation10 + $0x328] sm:$0xff]
    %v1887 = vld [vmem:[#allocation10 + $0x330] sm:$0xff]
    %v1888 = vld [vmem:[#allocation10 + $0x338] sm:$0xff]
    %v1889 = vld [vmem:[#allocation10 + $0x340] sm:$0xff]
    %v1890 = vld [vmem:[#allocation10 + $0x348] sm:$0xff]
    %v1891 = vld [vmem:[#allocation10 + $0x350] sm:$0xff]
    %v1892 = vld [vmem:[#allocation10 + $0x358] sm:$0xff]
    %v1893 = vld [vmem:[#allocation10 + $0x360] sm:$0xff]
    %v1894 = vld [vmem:[#allocation10 + $0x368] sm:$0xff]
    %v1895 = vld [vmem:[#allocation10 + $0x370] sm:$0xff]
    %v1896 = vld [vmem:[#allocation10 + $0x378] sm:$0xff]
    %v1897 = vld [vmem:[#allocation10 + $0x380] sm:$0xff]
    %v1898 = vld [vmem:[#allocation10 + $0x388] sm:$0xff]
    %v1899 = vld [vmem:[#allocation10 + $0x390] sm:$0xff]
    %v1900 = vld [vmem:[#allocation10 + $0x398] sm:$0xff]
    %v1901 = vld [vmem:[#allocation10 + $0x3a0] sm:$0xff]
    %v1902 = vld [vmem:[#allocation10 + $0x3a8] sm:$0xff]
    %v1903 = vld [vmem:[#allocation10 + $0x3b0] sm:$0xff]
    %v1904 = vld [vmem:[#allocation10 + $0x3b8] sm:$0xff]
    %v1905 = vld [vmem:[#allocation10 + $0x3c0] sm:$0xff]
    %v1906 = vld [vmem:[#allocation10 + $0x3c8] sm:$0xff]
    %v1907 = vld [vmem:[#allocation10 + $0x3d0] sm:$0xff]
    %v1908 = vld [vmem:[#allocation10 + $0x3d8] sm:$0xff]
    %v1909 = vld [vmem:[#allocation10 + $0x3e0] sm:$0xff]
    %v1910 = vld [vmem:[#allocation10 + $0x3e8] sm:$0xff]
    %v1911 = vld [vmem:[#allocation10 + $0x3f0] sm:$0xff]
    %v1912 = vld [vmem:[#allocation10 + $0x3f8] sm:$0xff]
    %v1913 = vld [vmem:[%s20] sm:$0xff]
    %v1915 = vperm.slane %v1913, 0
    %v1916 = vperm.slane %v1913, 1
    %v1917 = vperm.slane %v1913, 2
    %v1918 = vperm.slane %v1913, 3
    %v1919 = vperm.slane %v1913, 4
    %v1920 = vperm.slane %v1913, 5
    %v1921 = vperm.slane %v1913, 6
    %v1922 = vperm.slane %v1913, 7
    %v2059 = vunpack.c.l.b16 %v1785
    %v2060 = vunpack.c.h.b16 %v1785
    %v2061 = vunpack.c.l.b16 %v1786
    %v2062 = vunpack.c.h.b16 %v1786
    %v2063 = vunpack.c.l.b16 %v1787
    %v2064 = vunpack.c.h.b16 %v1787
    %v2065 = vunpack.c.l.b16 %v1788
    %v2066 = vunpack.c.h.b16 %v1788
    %v2067 = vunpack.c.l.b16 %v1789
    %v2068 = vunpack.c.h.b16 %v1789
    %v2069 = vunpack.c.l.b16 %v1790
    %v2070 = vunpack.c.h.b16 %v1790
    %v2071 = vunpack.c.l.b16 %v1791
    %v2072 = vunpack.c.h.b16 %v1791
    %v2073 = vunpack.c.l.b16 %v1792
    %v2074 = vunpack.c.h.b16 %v1792
    %v2075 = vunpack.c.l.b16 %v1793
    %v2076 = vunpack.c.h.b16 %v1793
    %v2077 = vunpack.c.l.b16 %v1794
    %v2078 = vunpack.c.h.b16 %v1794
    %v2079 = vunpack.c.l.b16 %v1795
    %v2080 = vunpack.c.h.b16 %v1795
    %v2081 = vunpack.c.l.b16 %v1796
    %v2082 = vunpack.c.h.b16 %v1796
    %v2083 = vunpack.c.l.b16 %v1797
    %v2084 = vunpack.c.h.b16 %v1797
    %v2085 = vunpack.c.l.b16 %v1798
    %v2086 = vunpack.c.h.b16 %v1798
    %v2087 = vunpack.c.l.b16 %v1799
    %v2088 = vunpack.c.h.b16 %v1799
    %v2089 = vunpack.c.l.b16 %v1800
    %v2090 = vunpack.c.h.b16 %v1800
    %v2091 = vunpack.c.l.b16 %v1801
    %v2092 = vunpack.c.h.b16 %v1801
    %v2093 = vunpack.c.l.b16 %v1802
    %v2094 = vunpack.c.h.b16 %v1802
    %v2095 = vunpack.c.l.b16 %v1803
    %v2096 = vunpack.c.h.b16 %v1803
    %v2097 = vunpack.c.l.b16 %v1804
    %v2098 = vunpack.c.h.b16 %v1804
    %v2099 = vunpack.c.l.b16 %v1805
    %v2100 = vunpack.c.h.b16 %v1805
    %v2101 = vunpack.c.l.b16 %v1806
    %v2102 = vunpack.c.h.b16 %v1806
    %v2103 = vunpack.c.l.b16 %v1807
    %v2104 = vunpack.c.h.b16 %v1807
    %v2105 = vunpack.c.l.b16 %v1808
    %v2106 = vunpack.c.h.b16 %v1808
    %v2107 = vunpack.c.l.b16 %v1809
    %v2108 = vunpack.c.h.b16 %v1809
    %v2109 = vunpack.c.l.b16 %v1810
    %v2110 = vunpack.c.h.b16 %v1810
    %v2111 = vunpack.c.l.b16 %v1811
    %v2112 = vunpack.c.h.b16 %v1811
    %v2113 = vunpack.c.l.b16 %v1812
    %v2114 = vunpack.c.h.b16 %v1812
    %v2115 = vunpack.c.l.b16 %v1813
    %v2116 = vunpack.c.h.b16 %v1813
    %v2117 = vunpack.c.l.b16 %v1814
    %v2118 = vunpack.c.h.b16 %v1814
    %v2119 = vunpack.c.l.b16 %v1815
    %v2120 = vunpack.c.h.b16 %v1815
    %v2121 = vunpack.c.l.b16 %v1816
    %v2122 = vunpack.c.h.b16 %v1816
    %v2123 = vunpack.c.l.b16 %v1817
    %v2124 = vunpack.c.h.b16 %v1817
    %v2125 = vunpack.c.l.b16 %v1818
    %v2126 = vunpack.c.h.b16 %v1818
    %v2127 = vunpack.c.l.b16 %v1819
    %v2128 = vunpack.c.h.b16 %v1819
    %v2129 = vunpack.c.l.b16 %v1820
    %v2130 = vunpack.c.h.b16 %v1820
    %v2131 = vunpack.c.l.b16 %v1821
    %v2132 = vunpack.c.h.b16 %v1821
    %v2133 = vunpack.c.l.b16 %v1822
    %v2134 = vunpack.c.h.b16 %v1822
    %v2135 = vunpack.c.l.b16 %v1823
    %v2136 = vunpack.c.h.b16 %v1823
    %v2137 = vunpack.c.l.b16 %v1824
    %v2138 = vunpack.c.h.b16 %v1824
    %v2139 = vunpack.c.l.b16 %v1825
    %v2140 = vunpack.c.h.b16 %v1825
    %v2141 = vunpack.c.l.b16 %v1826
    %v2142 = vunpack.c.h.b16 %v1826
    %v2143 = vunpack.c.l.b16 %v1827
    %v2144 = vunpack.c.h.b16 %v1827
    %v2145 = vunpack.c.l.b16 %v1828
    %v2146 = vunpack.c.h.b16 %v1828
    %v2147 = vunpack.c.l.b16 %v1829
    %v2148 = vunpack.c.h.b16 %v1829
    %v2149 = vunpack.c.l.b16 %v1830
    %v2150 = vunpack.c.h.b16 %v1830
    %v2151 = vunpack.c.l.b16 %v1831
    %v2152 = vunpack.c.h.b16 %v1831
    %v2153 = vunpack.c.l.b16 %v1832
    %v2154 = vunpack.c.h.b16 %v1832
    %v2155 = vunpack.c.l.b16 %v1833
    %v2156 = vunpack.c.h.b16 %v1833
    %v2157 = vunpack.c.l.b16 %v1834
    %v2158 = vunpack.c.h.b16 %v1834
    %v2159 = vunpack.c.l.b16 %v1835
    %v2160 = vunpack.c.h.b16 %v1835
    %v2161 = vunpack.c.l.b16 %v1836
    %v2162 = vunpack.c.h.b16 %v1836
    %v2163 = vunpack.c.l.b16 %v1837
    %v2164 = vunpack.c.h.b16 %v1837
    %v2165 = vunpack.c.l.b16 %v1838
    %v2166 = vunpack.c.h.b16 %v1838
    %v2167 = vunpack.c.l.b16 %v1839
    %v2168 = vunpack.c.h.b16 %v1839
    %v2169 = vunpack.c.l.b16 %v1840
    %v2170 = vunpack.c.h.b16 %v1840
    %v2171 = vunpack.c.l.b16 %v1841
    %v2172 = vunpack.c.h.b16 %v1841
    %v2173 = vunpack.c.l.b16 %v1842
    %v2174 = vunpack.c.h.b16 %v1842
    %v2175 = vunpack.c.l.b16 %v1843
    %v2176 = vunpack.c.h.b16 %v1843
    %v2177 = vunpack.c.l.b16 %v1844
    %v2178 = vunpack.c.h.b16 %v1844
    %v2179 = vunpack.c.l.b16 %v1845
    %v2180 = vunpack.c.h.b16 %v1845
    %v2181 = vunpack.c.l.b16 %v1846
    %v2182 = vunpack.c.h.b16 %v1846
    %v2183 = vunpack.c.l.b16 %v1847
    %v2184 = vunpack.c.h.b16 %v1847
    %v2185 = vunpack.c.l.b16 %v1848
    %v2186 = vunpack.c.h.b16 %v1848
    %v2187 = vunpack.c.l.b16 %v1849
    %v2188 = vunpack.c.h.b16 %v1849
    %v2189 = vunpack.c.l.b16 %v1850
    %v2190 = vunpack.c.h.b16 %v1850
    %v2191 = vunpack.c.l.b16 %v1851
    %v2192 = vunpack.c.h.b16 %v1851
    %v2193 = vunpack.c.l.b16 %v1852
    %v2194 = vunpack.c.h.b16 %v1852
    %v2195 = vunpack.c.l.b16 %v1853
    %v2196 = vunpack.c.h.b16 %v1853
    %v2197 = vunpack.c.l.b16 %v1854
    %v2198 = vunpack.c.h.b16 %v1854
    %v2199 = vunpack.c.l.b16 %v1855
    %v2200 = vunpack.c.h.b16 %v1855
    %v2201 = vunpack.c.l.b16 %v1856
    %v2202 = vunpack.c.h.b16 %v1856
    %v2203 = vunpack.c.l.b16 %v1857
    %v2204 = vunpack.c.h.b16 %v1857
    %v2205 = vunpack.c.l.b16 %v1858
    %v2206 = vunpack.c.h.b16 %v1858
    %v2207 = vunpack.c.l.b16 %v1859
    %v2208 = vunpack.c.h.b16 %v1859
    %v2209 = vunpack.c.l.b16 %v1860
    %v2210 = vunpack.c.h.b16 %v1860
    %v2211 = vunpack.c.l.b16 %v1861
    %v2212 = vunpack.c.h.b16 %v1861
    %v2213 = vunpack.c.l.b16 %v1862
    %v2214 = vunpack.c.h.b16 %v1862
    %v2215 = vunpack.c.l.b16 %v1863
    %v2216 = vunpack.c.h.b16 %v1863
    %v2217 = vunpack.c.l.b16 %v1864
    %v2218 = vunpack.c.h.b16 %v1864
    %v2219 = vunpack.c.l.b16 %v1865
    %v2220 = vunpack.c.h.b16 %v1865
    %v2221 = vunpack.c.l.b16 %v1866
    %v2222 = vunpack.c.h.b16 %v1866
    %v2223 = vunpack.c.l.b16 %v1867
    %v2224 = vunpack.c.h.b16 %v1867
    %v2225 = vunpack.c.l.b16 %v1868
    %v2226 = vunpack.c.h.b16 %v1868
    %v2227 = vunpack.c.l.b16 %v1869
    %v2228 = vunpack.c.h.b16 %v1869
    %v2229 = vunpack.c.l.b16 %v1870
    %v2230 = vunpack.c.h.b16 %v1870
    %v2231 = vunpack.c.l.b16 %v1871
    %v2232 = vunpack.c.h.b16 %v1871
    %v2233 = vunpack.c.l.b16 %v1872
    %v2234 = vunpack.c.h.b16 %v1872
    %v2235 = vunpack.c.l.b16 %v1873
    %v2236 = vunpack.c.h.b16 %v1873
    %v2237 = vunpack.c.l.b16 %v1874
    %v2238 = vunpack.c.h.b16 %v1874
    %v2239 = vunpack.c.l.b16 %v1875
    %v2240 = vunpack.c.h.b16 %v1875
    %v2241 = vunpack.c.l.b16 %v1876
    %v2242 = vunpack.c.h.b16 %v1876
    %v2243 = vunpack.c.l.b16 %v1877
    %v2244 = vunpack.c.h.b16 %v1877
    %v2245 = vunpack.c.l.b16 %v1878
    %v2246 = vunpack.c.h.b16 %v1878
    %v2247 = vunpack.c.l.b16 %v1879
    %v2248 = vunpack.c.h.b16 %v1879
    %v2249 = vunpack.c.l.b16 %v1880
    %v2250 = vunpack.c.h.b16 %v1880
    %v2251 = vunpack.c.l.b16 %v1881
    %v2252 = vunpack.c.h.b16 %v1881
    %v2253 = vunpack.c.l.b16 %v1882
    %v2254 = vunpack.c.h.b16 %v1882
    %v2255 = vunpack.c.l.b16 %v1883
    %v2256 = vunpack.c.h.b16 %v1883
    %v2257 = vunpack.c.l.b16 %v1884
    %v2258 = vunpack.c.h.b16 %v1884
    %v2259 = vunpack.c.l.b16 %v1885
    %v2260 = vunpack.c.h.b16 %v1885
    %v2261 = vunpack.c.l.b16 %v1886
    %v2262 = vunpack.c.h.b16 %v1886
    %v2263 = vunpack.c.l.b16 %v1887
    %v2264 = vunpack.c.h.b16 %v1887
    %v2265 = vunpack.c.l.b16 %v1888
    %v2266 = vunpack.c.h.b16 %v1888
    %v2267 = vunpack.c.l.b16 %v1889
    %v2268 = vunpack.c.h.b16 %v1889
    %v2269 = vunpack.c.l.b16 %v1890
    %v2270 = vunpack.c.h.b16 %v1890
    %v2271 = vunpack.c.l.b16 %v1891
    %v2272 = vunpack.c.h.b16 %v1891
    %v2273 = vunpack.c.l.b16 %v1892
    %v2274 = vunpack.c.h.b16 %v1892
    %v2275 = vunpack.c.l.b16 %v1893
    %v2276 = vunpack.c.h.b16 %v1893
    %v2277 = vunpack.c.l.b16 %v1894
    %v2278 = vunpack.c.h.b16 %v1894
    %v2279 = vunpack.c.l.b16 %v1895
    %v2280 = vunpack.c.h.b16 %v1895
    %v2281 = vunpack.c.l.b16 %v1896
    %v2282 = vunpack.c.h.b16 %v1896
    %v2283 = vunpack.c.l.b16 %v1897
    %v2284 = vunpack.c.h.b16 %v1897
    %v2285 = vunpack.c.l.b16 %v1898
    %v2286 = vunpack.c.h.b16 %v1898
    %v2287 = vunpack.c.l.b16 %v1899
    %v2288 = vunpack.c.h.b16 %v1899
    %v2289 = vunpack.c.l.b16 %v1900
    %v2290 = vunpack.c.h.b16 %v1900
    %v2291 = vunpack.c.l.b16 %v1901
    %v2292 = vunpack.c.h.b16 %v1901
    %v2293 = vunpack.c.l.b16 %v1902
    %v2294 = vunpack.c.h.b16 %v1902
    %v2295 = vunpack.c.l.b16 %v1903
    %v2296 = vunpack.c.h.b16 %v1903
    %v2297 = vunpack.c.l.b16 %v1904
    %v2298 = vunpack.c.h.b16 %v1904
    %v2299 = vunpack.c.l.b16 %v1905
    %v2300 = vunpack.c.h.b16 %v1905
    %v2301 = vunpack.c.l.b16 %v1906
    %v2302 = vunpack.c.h.b16 %v1906
    %v2303 = vunpack.c.l.b16 %v1907
    %v2304 = vunpack.c.h.b16 %v1907
    %v2305 = vunpack.c.l.b16 %v1908
    %v2306 = vunpack.c.h.b16 %v1908
    %v2307 = vunpack.c.l.b16 %v1909
    %v2308 = vunpack.c.h.b16 %v1909
    %v2309 = vunpack.c.l.b16 %v1910
    %v2310 = vunpack.c.h.b16 %v1910
    %v2311 = vunpack.c.l.b16 %v1911
    %v2312 = vunpack.c.h.b16 %v1911
    %v2313 = vunpack.c.l.b16 %v1912
    %v2314 = vunpack.c.h.b16 %v1912
    %v2315 = vpack.c.b16 %v2067, %v2059
    %v2316 = vpack.c.b16 %v2068, %v2060
    %v2317 = vpack.c.b16 %v2069, %v2061
    %v2318 = vpack.c.b16 %v2070, %v2062
    %v2319 = vpack.c.b16 %v2071, %v2063
    %v2320 = vpack.c.b16 %v2072, %v2064
    %v2321 = vpack.c.b16 %v2073, %v2065
    %v2322 = vpack.c.b16 %v2074, %v2066
    %v2323 = vpack.c.b16 %v2083, %v2075
    %v2324 = vpack.c.b16 %v2084, %v2076
    %v2325 = vpack.c.b16 %v2085, %v2077
    %v2326 = vpack.c.b16 %v2086, %v2078
    %v2327 = vpack.c.b16 %v2087, %v2079
    %v2328 = vpack.c.b16 %v2088, %v2080
    %v2329 = vpack.c.b16 %v2089, %v2081
    %v2330 = vpack.c.b16 %v2090, %v2082
    %v2331 = vpack.c.b16 %v2099, %v2091
    %v2332 = vpack.c.b16 %v2100, %v2092
    %v2333 = vpack.c.b16 %v2101, %v2093
    %v2334 = vpack.c.b16 %v2102, %v2094
    %v2335 = vpack.c.b16 %v2103, %v2095
    %v2336 = vpack.c.b16 %v2104, %v2096
    %v2337 = vpack.c.b16 %v2105, %v2097
    %v2338 = vpack.c.b16 %v2106, %v2098
    %v2339 = vpack.c.b16 %v2115, %v2107
    %v2340 = vpack.c.b16 %v2116, %v2108
    %v2341 = vpack.c.b16 %v2117, %v2109
    %v2342 = vpack.c.b16 %v2118, %v2110
    %v2343 = vpack.c.b16 %v2119, %v2111
    %v2344 = vpack.c.b16 %v2120, %v2112
    %v2345 = vpack.c.b16 %v2121, %v2113
    %v2346 = vpack.c.b16 %v2122, %v2114
    %v2347 = vpack.c.b16 %v2131, %v2123
    %v2348 = vpack.c.b16 %v2132, %v2124
    %v2349 = vpack.c.b16 %v2133, %v2125
    %v2350 = vpack.c.b16 %v2134, %v2126
    %v2351 = vpack.c.b16 %v2135, %v2127
    %v2352 = vpack.c.b16 %v2136, %v2128
    %v2353 = vpack.c.b16 %v2137, %v2129
    %v2354 = vpack.c.b16 %v2138, %v2130
    %v2355 = vpack.c.b16 %v2147, %v2139
    %v2356 = vpack.c.b16 %v2148, %v2140
    %v2357 = vpack.c.b16 %v2149, %v2141
    %v2358 = vpack.c.b16 %v2150, %v2142
    %v2359 = vpack.c.b16 %v2151, %v2143
    %v2360 = vpack.c.b16 %v2152, %v2144
    %v2361 = vpack.c.b16 %v2153, %v2145
    %v2362 = vpack.c.b16 %v2154, %v2146
    %v2363 = vpack.c.b16 %v2163, %v2155
    %v2364 = vpack.c.b16 %v2164, %v2156
    %v2365 = vpack.c.b16 %v2165, %v2157
    %v2366 = vpack.c.b16 %v2166, %v2158
    %v2367 = vpack.c.b16 %v2167, %v2159
    %v2368 = vpack.c.b16 %v2168, %v2160
    %v2369 = vpack.c.b16 %v2169, %v2161
    %v2370 = vpack.c.b16 %v2170, %v2162
    %v2371 = vpack.c.b16 %v2179, %v2171
    %v2372 = vpack.c.b16 %v2180, %v2172
    %v2373 = vpack.c.b16 %v2181, %v2173
    %v2374 = vpack.c.b16 %v2182, %v2174
    %v2375 = vpack.c.b16 %v2183, %v2175
    %v2376 = vpack.c.b16 %v2184, %v2176
    %v2377 = vpack.c.b16 %v2185, %v2177
    %v2378 = vpack.c.b16 %v2186, %v2178
    %v2379 = vpack.c.b16 %v2195, %v2187
    %v2380 = vpack.c.b16 %v2196, %v2188
    %v2381 = vpack.c.b16 %v2197, %v2189
    %v2382 = vpack.c.b16 %v2198, %v2190
    %v2383 = vpack.c.b16 %v2199, %v2191
    %v2384 = vpack.c.b16 %v2200, %v2192
    %v2385 = vpack.c.b16 %v2201, %v2193
    %v2386 = vpack.c.b16 %v2202, %v2194
    %v2387 = vpack.c.b16 %v2211, %v2203
    %v2388 = vpack.c.b16 %v2212, %v2204
    %v2389 = vpack.c.b16 %v2213, %v2205
    %v2390 = vpack.c.b16 %v2214, %v2206
    %v2391 = vpack.c.b16 %v2215, %v2207
    %v2392 = vpack.c.b16 %v2216, %v2208
    %v2393 = vpack.c.b16 %v2217, %v2209
    %v2394 = vpack.c.b16 %v2218, %v2210
    %v2395 = vpack.c.b16 %v2227, %v2219
    %v2396 = vpack.c.b16 %v2228, %v2220
    %v2397 = vpack.c.b16 %v2229, %v2221
    %v2398 = vpack.c.b16 %v2230, %v2222
    %v2399 = vpack.c.b16 %v2231, %v2223
    %v2400 = vpack.c.b16 %v2232, %v2224
    %v2401 = vpack.c.b16 %v2233, %v2225
    %v2402 = vpack.c.b16 %v2234, %v2226
    %v2403 = vpack.c.b16 %v2243, %v2235
    %v2404 = vpack.c.b16 %v2244, %v2236
    %v2405 = vpack.c.b16 %v2245, %v2237
    %v2406 = vpack.c.b16 %v2246, %v2238
    %v2407 = vpack.c.b16 %v2247, %v2239
    %v2408 = vpack.c.b16 %v2248, %v2240
    %v2409 = vpack.c.b16 %v2249, %v2241
    %v2410 = vpack.c.b16 %v2250, %v2242
    %v2411 = vpack.c.b16 %v2259, %v2251
    %v2412 = vpack.c.b16 %v2260, %v2252
    %v2413 = vpack.c.b16 %v2261, %v2253
    %v2414 = vpack.c.b16 %v2262, %v2254
    %v2415 = vpack.c.b16 %v2263, %v2255
    %v2416 = vpack.c.b16 %v2264, %v2256
    %v2417 = vpack.c.b16 %v2265, %v2257
    %v2418 = vpack.c.b16 %v2266, %v2258
    %v2419 = vpack.c.b16 %v2275, %v2267
    %v2420 = vpack.c.b16 %v2276, %v2268
    %v2421 = vpack.c.b16 %v2277, %v2269
    %v2422 = vpack.c.b16 %v2278, %v2270
    %v2423 = vpack.c.b16 %v2279, %v2271
    %v2424 = vpack.c.b16 %v2280, %v2272
    %v2425 = vpack.c.b16 %v2281, %v2273
    %v2426 = vpack.c.b16 %v2282, %v2274
    %v2427 = vpack.c.b16 %v2291, %v2283
    %v2428 = vpack.c.b16 %v2292, %v2284
    %v2429 = vpack.c.b16 %v2293, %v2285
    %v2430 = vpack.c.b16 %v2294, %v2286
    %v2431 = vpack.c.b16 %v2295, %v2287
    %v2432 = vpack.c.b16 %v2296, %v2288
    %v2433 = vpack.c.b16 %v2297, %v2289
    %v2434 = vpack.c.b16 %v2298, %v2290
    %v2435 = vpack.c.b16 %v2307, %v2299
    %v2436 = vpack.c.b16 %v2308, %v2300
    %v2437 = vpack.c.b16 %v2309, %v2301
    %v2438 = vpack.c.b16 %v2310, %v2302
    %v2439 = vpack.c.b16 %v2311, %v2303
    %v2440 = vpack.c.b16 %v2312, %v2304
    %v2441 = vpack.c.b16 %v2313, %v2305
    %v2442 = vpack.c.b16 %v2314, %v2306
    %2571 = vmatpush.bf16.msra.mxu0 %v2371
    %2572 = vmatpush.bf16.msra.mxu0 %v2363
    %2573 = vmatpush.bf16.msra.mxu0 %v2355
    %2574 = vmatpush.bf16.msra.mxu0 %v2347
    %2575 = vmatpush.bf16.msra.mxu0 %v2339
    %2576 = vmatpush.bf16.msra.mxu0 %v2331
    %2577 = vmatpush.bf16.msra.mxu0 %v2323
    %2578 = vmatpush.bf16.msra.mxu0 %v2315
    %2579 = vmatmul.bf16.gmra.mxu0 %v1783
    %v2580 = vpop.f32.mrf.mxu0
    %v2581 = vadd.f32 %v1915, %v2580
    %v2582 = vpop.f32.mrf.mxu0
    %2583 = vdwg.mxu0
    %2584 = vmatpush.bf16.msra.mxu0 %v2435
    %2585 = vmatpush.bf16.msra.mxu0 %v2427
    %2586 = vmatpush.bf16.msra.mxu0 %v2419
    %2587 = vmatpush.bf16.msra.mxu0 %v2411
    %2588 = vmatpush.bf16.msra.mxu0 %v2403
    %2589 = vmatpush.bf16.msra.mxu0 %v2395
    %2590 = vmatpush.bf16.msra.mxu0 %v2387
    %2591 = vmatpush.bf16.msra.mxu0 %v2379
    %2592 = vmatmul.bf16.gmra.mxu0 %v1784
    %v2593 = vpop.f32.mrf.mxu0
    %v2594 = vadd.f32 %v2581, %v2593
    %v2595 = vpop.f32.mrf.mxu0
    %2596 = vdwg.mxu0
    %2597 = vmatpush.bf16.msra.mxu0 %v2372
    %2598 = vmatpush.bf16.msra.mxu0 %v2364
    %2599 = vmatpush.bf16.msra.mxu0 %v2356
    %2600 = vmatpush.bf16.msra.mxu0 %v2348
    %2601 = vmatpush.bf16.msra.mxu0 %v2340
    %2602 = vmatpush.bf16.msra.mxu0 %v2332
    %2603 = vmatpush.bf16.msra.mxu0 %v2324
    %2604 = vmatpush.bf16.msra.mxu0 %v2316
    %2605 = vmatmul.bf16.gmra.mxu0 %v1783
    %v2606 = vpop.f32.mrf.mxu0
    %v2607 = vadd.f32 %v1916, %v2606
    %v2608 = vpop.f32.mrf.mxu0
    %2609 = vdwg.mxu0
    %2610 = vmatpush.bf16.msra.mxu0 %v2436
    %2611 = vmatpush.bf16.msra.mxu0 %v2428
    %2612 = vmatpush.bf16.msra.mxu0 %v2420
    %2613 = vmatpush.bf16.msra.mxu0 %v2412
    %2614 = vmatpush.bf16.msra.mxu0 %v2404
    %2615 = vmatpush.bf16.msra.mxu0 %v2396
    %2616 = vmatpush.bf16.msra.mxu0 %v2388
    %2617 = vmatpush.bf16.msra.mxu0 %v2380
    %2618 = vmatmul.bf16.gmra.mxu0 %v1784
    %v2619 = vpop.f32.mrf.mxu0
    %v2620 = vadd.f32 %v2607, %v2619
    %v2621 = vpop.f32.mrf.mxu0
    %2622 = vdwg.mxu0
    %2623 = vmatpush.bf16.msra.mxu0 %v2373
    %2624 = vmatpush.bf16.msra.mxu0 %v2365
    %2625 = vmatpush.bf16.msra.mxu0 %v2357
    %2626 = vmatpush.bf16.msra.mxu0 %v2349
    %2627 = vmatpush.bf16.msra.mxu0 %v2341
    %2628 = vmatpush.bf16.msra.mxu0 %v2333
    %2629 = vmatpush.bf16.msra.mxu0 %v2325
    %2630 = vmatpush.bf16.msra.mxu0 %v2317
    %2631 = vmatmul.bf16.gmra.mxu0 %v1783
    %v2632 = vpop.f32.mrf.mxu0
    %v2633 = vadd.f32 %v1917, %v2632
    %v2634 = vpop.f32.mrf.mxu0
    %2635 = vdwg.mxu0
    %2636 = vmatpush.bf16.msra.mxu0 %v2437
    %2637 = vmatpush.bf16.msra.mxu0 %v2429
    %2638 = vmatpush.bf16.msra.mxu0 %v2421
    %2639 = vmatpush.bf16.msra.mxu0 %v2413
    %2640 = vmatpush.bf16.msra.mxu0 %v2405
    %2641 = vmatpush.bf16.msra.mxu0 %v2397
    %2642 = vmatpush.bf16.msra.mxu0 %v2389
    %2643 = vmatpush.bf16.msra.mxu0 %v2381
    %2644 = vmatmul.bf16.gmra.mxu0 %v1784
    %v2645 = vpop.f32.mrf.mxu0
    %v2646 = vadd.f32 %v2633, %v2645
    %v2647 = vpop.f32.mrf.mxu0
    %2648 = vdwg.mxu0
    %2649 = vmatpush.bf16.msra.mxu0 %v2374
    %2650 = vmatpush.bf16.msra.mxu0 %v2366
    %2651 = vmatpush.bf16.msra.mxu0 %v2358
    %2652 = vmatpush.bf16.msra.mxu0 %v2350
    %2653 = vmatpush.bf16.msra.mxu0 %v2342
    %2654 = vmatpush.bf16.msra.mxu0 %v2334
    %2655 = vmatpush.bf16.msra.mxu0 %v2326
    %2656 = vmatpush.bf16.msra.mxu0 %v2318
    %2657 = vmatmul.bf16.gmra.mxu0 %v1783
    %v2658 = vpop.f32.mrf.mxu0
    %v2659 = vadd.f32 %v1918, %v2658
    %v2660 = vpop.f32.mrf.mxu0
    %2661 = vdwg.mxu0
    %2662 = vmatpush.bf16.msra.mxu0 %v2438
    %2663 = vmatpush.bf16.msra.mxu0 %v2430
    %2664 = vmatpush.bf16.msra.mxu0 %v2422
    %2665 = vmatpush.bf16.msra.mxu0 %v2414
    %2666 = vmatpush.bf16.msra.mxu0 %v2406
    %2667 = vmatpush.bf16.msra.mxu0 %v2398
    %2668 = vmatpush.bf16.msra.mxu0 %v2390
    %2669 = vmatpush.bf16.msra.mxu0 %v2382
    %2670 = vmatmul.bf16.gmra.mxu0 %v1784
    %v2671 = vpop.f32.mrf.mxu0
    %v2672 = vadd.f32 %v2659, %v2671
    %v2673 = vpop.f32.mrf.mxu0
    %2674 = vdwg.mxu0
    %2675 = vmatpush.bf16.msra.mxu0 %v2375
    %2676 = vmatpush.bf16.msra.mxu0 %v2367
    %2677 = vmatpush.bf16.msra.mxu0 %v2359
    %2678 = vmatpush.bf16.msra.mxu0 %v2351
    %2679 = vmatpush.bf16.msra.mxu0 %v2343
    %2680 = vmatpush.bf16.msra.mxu0 %v2335
    %2681 = vmatpush.bf16.msra.mxu0 %v2327
    %2682 = vmatpush.bf16.msra.mxu0 %v2319
    %2683 = vmatmul.bf16.gmra.mxu0 %v1783
    %v2684 = vpop.f32.mrf.mxu0
    %v2685 = vadd.f32 %v1919, %v2684
    %v2686 = vpop.f32.mrf.mxu0
    %2687 = vdwg.mxu0
    %2688 = vmatpush.bf16.msra.mxu0 %v2439
    %2689 = vmatpush.bf16.msra.mxu0 %v2431
    %2690 = vmatpush.bf16.msra.mxu0 %v2423
    %2691 = vmatpush.bf16.msra.mxu0 %v2415
    %2692 = vmatpush.bf16.msra.mxu0 %v2407
    %2693 = vmatpush.bf16.msra.mxu0 %v2399
    %2694 = vmatpush.bf16.msra.mxu0 %v2391
    %2695 = vmatpush.bf16.msra.mxu0 %v2383
    %2696 = vmatmul.bf16.gmra.mxu0 %v1784
    %v2697 = vpop.f32.mrf.mxu0
    %v2698 = vadd.f32 %v2685, %v2697
    %v2699 = vpop.f32.mrf.mxu0
    %2700 = vdwg.mxu0
    %2701 = vmatpush.bf16.msra.mxu0 %v2376
    %2702 = vmatpush.bf16.msra.mxu0 %v2368
    %2703 = vmatpush.bf16.msra.mxu0 %v2360
    %2704 = vmatpush.bf16.msra.mxu0 %v2352
    %2705 = vmatpush.bf16.msra.mxu0 %v2344
    %2706 = vmatpush.bf16.msra.mxu0 %v2336
    %2707 = vmatpush.bf16.msra.mxu0 %v2328
    %2708 = vmatpush.bf16.msra.mxu0 %v2320
    %2709 = vmatmul.bf16.gmra.mxu0 %v1783
    %v2710 = vpop.f32.mrf.mxu0
    %v2711 = vadd.f32 %v1920, %v2710
    %v2712 = vpop.f32.mrf.mxu0
    %2713 = vdwg.mxu0
    %2714 = vmatpush.bf16.msra.mxu0 %v2440
    %2715 = vmatpush.bf16.msra.mxu0 %v2432
    %2716 = vmatpush.bf16.msra.mxu0 %v2424
    %2717 = vmatpush.bf16.msra.mxu0 %v2416
    %2718 = vmatpush.bf16.msra.mxu0 %v2408
    %2719 = vmatpush.bf16.msra.mxu0 %v2400
    %2720 = vmatpush.bf16.msra.mxu0 %v2392
    %2721 = vmatpush.bf16.msra.mxu0 %v2384
    %2722 = vmatmul.bf16.gmra.mxu0 %v1784
    %v2723 = vpop.f32.mrf.mxu0
    %v2724 = vadd.f32 %v2711, %v2723
    %v2725 = vpop.f32.mrf.mxu0
    %2726 = vdwg.mxu0
    %2727 = vmatpush.bf16.msra.mxu0 %v2377
    %2728 = vmatpush.bf16.msra.mxu0 %v2369
    %2729 = vmatpush.bf16.msra.mxu0 %v2361
    %2730 = vmatpush.bf16.msra.mxu0 %v2353
    %2731 = vmatpush.bf16.msra.mxu0 %v2345
    %2732 = vmatpush.bf16.msra.mxu0 %v2337
    %2733 = vmatpush.bf16.msra.mxu0 %v2329
    %2734 = vmatpush.bf16.msra.mxu0 %v2321
    %2735 = vmatmul.bf16.gmra.mxu0 %v1783
    %v2736 = vpop.f32.mrf.mxu0
    %v2737 = vadd.f32 %v1921, %v2736
    %v2738 = vpop.f32.mrf.mxu0
    %2739 = vdwg.mxu0
    %2740 = vmatpush.bf16.msra.mxu0 %v2441
    %2741 = vmatpush.bf16.msra.mxu0 %v2433
    %2742 = vmatpush.bf16.msra.mxu0 %v2425
    %2743 = vmatpush.bf16.msra.mxu0 %v2417
    %2744 = vmatpush.bf16.msra.mxu0 %v2409
    %2745 = vmatpush.bf16.msra.mxu0 %v2401
    %2746 = vmatpush.bf16.msra.mxu0 %v2393
    %2747 = vmatpush.bf16.msra.mxu0 %v2385
    %2748 = vmatmul.bf16.gmra.mxu0 %v1784
    %v2749 = vpop.f32.mrf.mxu0
    %v2750 = vadd.f32 %v2737, %v2749
    %v2751 = vpop.f32.mrf.mxu0
    %2752 = vdwg.mxu0
    %2753 = vmatpush.bf16.msra.mxu0 %v2378
    %2754 = vmatpush.bf16.msra.mxu0 %v2370
    %2755 = vmatpush.bf16.msra.mxu0 %v2362
    %2756 = vmatpush.bf16.msra.mxu0 %v2354
    %2757 = vmatpush.bf16.msra.mxu0 %v2346
    %2758 = vmatpush.bf16.msra.mxu0 %v2338
    %2759 = vmatpush.bf16.msra.mxu0 %v2330
    %2760 = vmatpush.bf16.msra.mxu0 %v2322
    %2761 = vmatmul.bf16.gmra.mxu0 %v1783
    %v2762 = vpop.f32.mrf.mxu0
    %v2763 = vadd.f32 %v1922, %v2762
    %v2764 = vpop.f32.mrf.mxu0
    %2765 = vdwg.mxu0
    %2766 = vmatpush.bf16.msra.mxu0 %v2442
    %2767 = vmatpush.bf16.msra.mxu0 %v2434
    %2768 = vmatpush.bf16.msra.mxu0 %v2426
    %2769 = vmatpush.bf16.msra.mxu0 %v2418
    %2770 = vmatpush.bf16.msra.mxu0 %v2410
    %2771 = vmatpush.bf16.msra.mxu0 %v2402
    %2772 = vmatpush.bf16.msra.mxu0 %v2394
    %2773 = vmatpush.bf16.msra.mxu0 %v2386
    %2774 = vmatmul.bf16.gmra.mxu0 %v1784
    %v2775 = vpop.f32.mrf.mxu0
    %v2776 = vadd.f32 %v2763, %v2775
    %v2777 = vpop.f32.mrf.mxu0
    %2778 = vdwg.mxu0
    %v2779 = vmax.f32 %v2594, 0.0
    %v2780 = vmax.f32 %v2620, 0.0
    %v2781 = vmax.f32 %v2646, 0.0
    %v2782 = vmax.f32 %v2672, 0.0
    %v2783 = vmax.f32 %v2698, 0.0
    %v2784 = vmax.f32 %v2724, 0.0
    %v2785 = vmax.f32 %v2750, 0.0
    %v2786 = vmax.f32 %v2776, 0.0
    %2787 = vst [vmem:[#allocation14] sm:$0xff] %v2779
    %2788 = vst [vmem:[#allocation14 + $0x8] sm:$0xff] %v2780
    %2789 = vst [vmem:[#allocation14 + $0x10] sm:$0xff] %v2781
    %2790 = vst [vmem:[#allocation14 + $0x18] sm:$0xff] %v2782
    %2791 = vst [vmem:[#allocation14 + $0x20] sm:$0xff] %v2783
    %2792 = vst [vmem:[#allocation14 + $0x28] sm:$0xff] %v2784
    %2793 = vst [vmem:[#allocation14 + $0x30] sm:$0xff] %v2785
    %2794 = vst [vmem:[#allocation14 + $0x38] sm:$0xff] %v2786
    // Predicated region
    $region114: #{tpu_custom_call.1} parent=1 // pred_check
      _
    $region115: #{tpu_custom_call.1} parent=1 // pred_check_branch
      %2796 = sbr.rel (0) target = $region117
    $region116: #{tpu_custom_call.1} parent=1 // pred_region
      %2798 = vsyncadd [#allocation4], 0
      %s2800 = sshll.u32 [#allocation14], 4
      %s2801 = int_to_ptr.vmem [resolvable:$true] %s2800
      %s2802 = sshll.u32 %s21, 4
      %s2803 = int_to_ptr.hbm [resolvable:$true] %s2802
      %2805 = dma.vmem_to_hbm [thread:$0]  %s2801, 1024, %s2803, [#allocation4]
    $region117: #{tpu_custom_call.1} parent=1 // pred_fallthru
      _
    // Predicated region
    $region118: #{tpu_custom_call.1} parent=1 // pred_check
      _
    $region119: #{tpu_custom_call.1} parent=1 // pred_check_branch
      %2807 = sbr.rel (0) target = $region121
    $region120: #{tpu_custom_call.1} parent=1 // pred_region
      %2809 = dma.done [#allocation4], 1024
    $region121: #{tpu_custom_call.1} parent=1 // pred_fallthru
      _
    %2810 = vsyncpa [#allocation3], 1
    %2811 = vsyncpa [#allocation6], 1
    %2812 = vsyncpa [#allocation9], 1
    %2813 = vsyncpa [#allocation12], 1
    %2814 = vsyncpa [#allocation4], 1

</llo_original>
